<compile_context>
chip_gen: v6e
topology: v6e:2x2x1
jax: 0.10.0
libtpu: 0.0.40
codegen_flags: <defaults>
</compile_context>

<pallas_src>
import functools

import jax
import jax.numpy as jnp
from jax.experimental import pallas as pl
from jax.experimental.pallas import tpu as pltpu


def _round_up(x, m):
    return (x + m - 1) // m * m


def _pow_const(x, gamma):
    # gamma is static; pick the cheapest lowering (sqrt lives on EUP,
    # general pow would be exp(gamma * log(x))).
    if gamma == 0.5:
        return jnp.sqrt(x)
    if gamma == 1.0:
        return x
    if gamma == 2.0:
        return x * x
    return jnp.power(x, jnp.float32(gamma))


def _nfl_mae_kernel(pred_ref, labels_ref, out_ref, *, n_rows, gamma, alpha, beta):
    # pred_ref:   (T, C)   logits tile (f32 or bf16), VMEM, C unpadded (e.g. 9)
    # labels_ref: (T, 1)   int32 labels tile, VMEM
    # out_ref:    (8, 128) f32 per-tile partial sum (replicated), VMEM
    i = pl.program_id(0)
    T, C = pred_ref.shape

    pred = pred_ref[...].astype(jnp.float32)                      # [T, C]
    labels = labels_ref[...]                                      # [T, 1] int32

    # Row-validity mask handles the ragged last tile (unspecified VMEM rows are
    # discarded by a select, so NaN/Inf there cannot leak into the partial sum).
    row = jax.lax.broadcasted_iota(jnp.int32, (T, 1), 0) + i * T
    row_valid = row < n_rows                                      # [T, 1] bool

    # Numerically stable softmax / log-softmax (one exp pass, one log per row).
    m = jnp.max(pred, axis=-1, keepdims=True)                     # [T, 1]
    shifted = pred - m                                            # [T, C]
    e = jnp.exp(shifted)                                          # [T, C] (EUP)
    sum_e = jnp.sum(e, axis=-1, keepdims=True)                    # [T, 1]
    inv_sum = pl.reciprocal(sum_e)                                # [T, 1] exact
    log_sum_e = jnp.log(sum_e)                                    # [T, 1]
    logpt = shifted - log_sum_e                                   # [T, C]

    # (1 - p) as (sum_e - e) * inv_sum: >= 0 by construction, no clamp needed.
    one_minus_p = (sum_e - e) * inv_sum                           # [T, C]
    w = _pow_const(one_minus_p, gamma)                            # [T, C] (EUP)
    # denom = sum_c (1-p)^gamma * logpt  == -normalizor (sign cancels below).
    denom = jnp.sum(w * logpt, axis=-1, keepdims=True)            # [T, 1]

    # One-hot gathers via a single shared class iota.
    col = jax.lax.broadcasted_iota(jnp.int32, (T, C), 1)          # [T, C]
    hot = col == labels                                           # [T, C]
    logpt_g = jnp.sum(jnp.where(hot, logpt, 0.0), axis=-1, keepdims=True)
    pt = jnp.exp(logpt_g)                                         # [T, 1] (EUP)

    # MAE uses one_hot(labels, num_classes)[:, 1:] -> hot column is labels - 1
    # (labels == 0 contributes nothing).
    hot_mae = jnp.logical_and(col == labels - 1, labels >= 1)     # [T, C]
    e_mae = jnp.sum(jnp.where(hot_mae, e, 0.0), axis=-1, keepdims=True)
    p_mae = e_mae * inv_sum                                       # softmax @ label-1

    # nfl = alpha * (-(1-pt)^g * logpt_g) / normalizor, with both minus signs folded.
    nfl = alpha * (_pow_const(jnp.maximum(1.0 - pt, 0.0), gamma) * logpt_g) / denom
    mae = beta * (1.0 - p_mae)

    loss_row = jnp.where(row_valid, nfl + mae, 0.0)               # [T, 1]
    partial = jnp.sum(loss_row, axis=0, keepdims=True)            # (1, 1)

    # Lane-dense, unmasked store of the per-tile partial (replicated over block).
    out_ref[...] = jnp.broadcast_to(partial, out_ref.shape).astype(jnp.float32)


@functools.partial(
    jax.jit,
    static_argnames=("num_classes", "gamma", "alpha", "beta", "tile_n", "core_parallel"))
def nfl_and_mae_loss(pred, labels, *, num_classes=10, gamma=0.5, alpha=1.0, beta=1.0,
                     tile_n=4096, core_parallel=False):
    """Forward pass of NFLandMAE. pred: [N, num_classes-1] logits, labels: [N] ints.

    Labels must lie in [0, num_classes-1) (same contract as torch.gather).
    Set core_parallel=True on v7x (2 TensorCores) to shard the batch grid axis.
    """
    N, C = pred.shape
    assert C == num_classes - 1, "pred must have num_classes - 1 columns (see module)"

    labels2d = labels.astype(jnp.int32).reshape(N, 1)

    # Batch tile: multiple of 8 sublanes; capped so it never exceeds the array
    # except for tiny N not divisible by 8, where we pad at most 7 rows.
    t = _round_up(min(int(tile_n), _round_up(N, 8)), 8)
    if t > N:
        pad = t - N                       # <= 7 rows, negligible
        pred = jnp.pad(pred, ((0, pad), (0, 0)))
        labels2d = jnp.pad(labels2d, ((0, pad), (0, 0)))
    num_tiles = pl.cdiv(N, t)

    kernel = functools.partial(
        _nfl_mae_kernel, n_rows=N,
        gamma=float(gamma), alpha=float(alpha), beta=float(beta))

    batch_sem = pltpu.CORE_PARALLEL if core_parallel else "parallel"

    partials = pl.pallas_call(
        kernel,
        out_shape=jax.ShapeDtypeStruct((num_tiles * 8, 128), jnp.float32),
        grid_spec=pltpu.PrefetchScalarGridSpec(
            num_scalar_prefetch=0,
            grid=(num_tiles,),
            in_specs=[
                # Unpadded logits tile: last block dim == full array dim (C) is legal
                # -> fully contiguous DMA, no HBM padding traffic.
                pl.BlockSpec((t, C), lambda i: (i, 0)),
                pl.BlockSpec((t, 1), lambda i: (i, 0)),
            ],
            out_specs=pl.BlockSpec((8, 128), lambda i: (i, 0)),
        ),
        compiler_params=pltpu.CompilerParams(
            dimension_semantics=(batch_sem,),
            vmem_limit_bytes=48 * 1024 * 1024,   # headroom for t=4096..8192, < v7x 64 MiB
        ),
    )(pred, labels2d)

    # One value per tile (block row 0, lane 0); final tiny reduction in XLA.
    per_tile = partials[::8, 0]
    return jnp.sum(per_tile) / jnp.float32(N)


def nfl_and_mae_ref(pred, labels, *, num_classes=10, gamma=0.5, alpha=1.0, beta=1.0):
    """Pure-JAX reference mirroring the PyTorch module's forward."""
    pred = pred.astype(jnp.float32)
    # NormalizedFocalLoss
    logpt = jax.nn.log_softmax(pred, axis=1)
    p = jnp.exp(logpt)
    normalizor = jnp.sum(-((1.0 - p) ** gamma) * logpt, axis=1)
    logpt_g = jnp.take_along_axis(logpt, labels[:, None], axis=1)[:, 0]
    pt = jnp.exp(logpt_g)
    nfl = alpha * (-((1.0 - pt) ** gamma) * logpt_g) / normalizor
    nfl_loss = jnp.mean(nfl)
    # MAELoss
    sm = jax.nn.softmax(pred, axis=1)
    onehot = jax.nn.one_hot(labels, num_classes, dtype=jnp.float32)[:, 1:]
    mae = 1.0 - jnp.sum(onehot * sm, axis=1)
    mae_loss = beta * jnp.mean(mae)
    return nfl_loss + mae_loss


if __name__ == "__main__":
    key = jax.random.PRNGKey(0)
    NUM_CLASSES = 10
    N, C = 800, NUM_CLASSES - 1   # pred has num_classes - 1 columns (see module)

    k_pred, k_lab = jax.random.split(key, 2)
    pred = jax.random.normal(k_pred, (N, C), dtype=jnp.float32)
    labels = jax.random.randint(k_lab, (N,), 0, C, dtype=jnp.int32)

    # tile_n=256 exercises a multi-tile grid with a ragged last tile (800 = 3*256 + 32).
    loss = nfl_and_mae_loss(pred, labels, num_classes=NUM_CLASSES,
                            gamma=0.5, alpha=1.0, beta=1.0, tile_n=256)
    jax.block_until_ready(loss)

    ref = nfl_and_mae_ref(pred, labels, num_classes=NUM_CLASSES,
                          gamma=0.5, alpha=1.0, beta=1.0)
    assert jnp.allclose(loss, ref, rtol=5e-5, atol=5e-5), (loss, ref)

    print("KERNEL_OK")
</pallas_src>

<mosaic_0001>
module attributes {stable_mosaic.version = 11 : i64} {
  func.func @_nfl_mae_kernel(%arg0: i32, %arg1: memref<256x9xf32, #tpu.memory_space<vmem>>, %arg2: memref<256x1xi32, #tpu.memory_space<vmem>>, %arg3: memref<8x128xf32, #tpu.memory_space<vmem>>) attributes {dimension_semantics = [#tpu.dimension_semantics<parallel>], iteration_bounds = array<i64: 4>, scalar_prefetch = 0 : i64, scratch_operands = 0 : i64, tpu.core_type = #tpu.core_type<tc>, window_params = [{transform_indices = @transform_0, window_bounds = array<i64: 256, 9>}, {transform_indices = @transform_1, window_bounds = array<i64: 256, 1>}, {transform_indices = @transform_2, window_bounds = array<i64: 8, 128>}]} {
    %c0 = arith.constant 0 : index
    %c0_0 = arith.constant 0 : index
    %0 = vector.load %arg1[%c0, %c0_0] : memref<256x9xf32, #tpu.memory_space<vmem>>, vector<256x9xf32>
    %c0_1 = arith.constant 0 : index
    %c0_2 = arith.constant 0 : index
    %1 = vector.load %arg2[%c0_1, %c0_2] : memref<256x1xi32, #tpu.memory_space<vmem>>, vector<256x1xi32>
    %2 = tpu.iota {dimensions = array<i32: 0>} : vector<256x1xi32>
    %c256_i32 = arith.constant 256 : i32
    %3 = arith.muli %arg0, %c256_i32 : i32
    %4 = vector.broadcast %3 : i32 to vector<256x1xi32>
    %5 = arith.addi %2, %4 : vector<256x1xi32>
    %c800_i32 = arith.constant 800 : i32
    %6 = vector.broadcast %c800_i32 : i32 to vector<256x1xi32>
    %7 = arith.cmpi slt, %5, %6 : vector<256x1xi32>
    %cst = arith.constant dense<0xFF800000> : vector<256xf32>
    %8 = vector.multi_reduction <maximumf>, %0, %cst [1] : vector<256x9xf32> to vector<256xf32>
    %9 = vector.shape_cast %8 : vector<256xf32> to vector<256x1xf32>
    %10 = vector.broadcast %9 : vector<256x1xf32> to vector<256x9xf32>
    %11 = arith.subf %0, %10 : vector<256x9xf32>
    %12 = math.exp %11 : vector<256x9xf32>
    %cst_3 = arith.constant dense<0.000000e+00> : vector<256xf32>
    %13 = vector.multi_reduction <add>, %12, %cst_3 [1] : vector<256x9xf32> to vector<256xf32>
    %14 = vector.shape_cast %13 : vector<256xf32> to vector<256x1xf32>
    %15 = tpu.reciprocal %14 : vector<256x1xf32> -> vector<256x1xf32>
    %16 = math.log %14 : vector<256x1xf32>
    %17 = vector.broadcast %16 : vector<256x1xf32> to vector<256x9xf32>
    %18 = arith.subf %11, %17 : vector<256x9xf32>
    %19 = vector.broadcast %14 : vector<256x1xf32> to vector<256x9xf32>
    %20 = arith.subf %19, %12 : vector<256x9xf32>
    %21 = vector.broadcast %15 : vector<256x1xf32> to vector<256x9xf32>
    %22 = arith.mulf %20, %21 : vector<256x9xf32>
    %23 = math.sqrt %22 : vector<256x9xf32>
    %24 = arith.mulf %23, %18 : vector<256x9xf32>
    %cst_4 = arith.constant dense<0.000000e+00> : vector<256xf32>
    %25 = vector.multi_reduction <add>, %24, %cst_4 [1] : vector<256x9xf32> to vector<256xf32>
    %26 = vector.shape_cast %25 : vector<256xf32> to vector<256x1xf32>
    %27 = tpu.iota {dimensions = array<i32: 1>} : vector<256x9xi32>
    %28 = vector.broadcast %1 : vector<256x1xi32> to vector<256x9xi32>
    %29 = arith.cmpi eq, %27, %28 : vector<256x9xi32>
    %cst_5 = arith.constant 0.000000e+00 : f32
    %30 = vector.broadcast %cst_5 : f32 to vector<256x9xf32>
    %31 = arith.select %29, %18, %30 : vector<256x9xi1>, vector<256x9xf32>
    %cst_6 = arith.constant dense<0.000000e+00> : vector<256xf32>
    %32 = vector.multi_reduction <add>, %31, %cst_6 [1] : vector<256x9xf32> to vector<256xf32>
    %33 = vector.shape_cast %32 : vector<256xf32> to vector<256x1xf32>
    %34 = math.exp %33 : vector<256x1xf32>
    %c1_i32 = arith.constant 1 : i32
    %35 = vector.broadcast %c1_i32 : i32 to vector<256x1xi32>
    %36 = arith.subi %1, %35 : vector<256x1xi32>
    %37 = vector.broadcast %36 : vector<256x1xi32> to vector<256x9xi32>
    %38 = arith.cmpi eq, %27, %37 : vector<256x9xi32>
    %c1_i32_7 = arith.constant 1 : i32
    %39 = vector.broadcast %c1_i32_7 : i32 to vector<256x1xi32>
    %40 = arith.cmpi sge, %1, %39 : vector<256x1xi32>
    %41 = vector.broadcast %40 : vector<256x1xi1> to vector<256x9xi1>
    %42 = arith.andi %38, %41 : vector<256x9xi1>
    %cst_8 = arith.constant 0.000000e+00 : f32
    %43 = vector.broadcast %cst_8 : f32 to vector<256x9xf32>
    %44 = arith.select %42, %12, %43 : vector<256x9xi1>, vector<256x9xf32>
    %cst_9 = arith.constant dense<0.000000e+00> : vector<256xf32>
    %45 = vector.multi_reduction <add>, %44, %cst_9 [1] : vector<256x9xf32> to vector<256xf32>
    %46 = vector.shape_cast %45 : vector<256xf32> to vector<256x1xf32>
    %47 = arith.mulf %46, %15 : vector<256x1xf32>
    %cst_10 = arith.constant 1.000000e+00 : f32
    %48 = vector.broadcast %cst_10 : f32 to vector<256x1xf32>
    %49 = arith.subf %48, %34 : vector<256x1xf32>
    %cst_11 = arith.constant 0.000000e+00 : f32
    %50 = vector.broadcast %cst_11 : f32 to vector<256x1xf32>
    %51 = arith.maximumf %49, %50 : vector<256x1xf32>
    %52 = math.sqrt %51 : vector<256x1xf32>
    %53 = arith.mulf %52, %33 : vector<256x1xf32>
    %cst_12 = arith.constant 1.000000e+00 : f32
    %54 = vector.broadcast %cst_12 : f32 to vector<256x1xf32>
    %55 = arith.mulf %54, %53 : vector<256x1xf32>
    %56 = arith.divf %55, %26 : vector<256x1xf32>
    %cst_13 = arith.constant 1.000000e+00 : f32
    %57 = vector.broadcast %cst_13 : f32 to vector<256x1xf32>
    %58 = arith.subf %57, %47 : vector<256x1xf32>
    %cst_14 = arith.constant 1.000000e+00 : f32
    %59 = vector.broadcast %cst_14 : f32 to vector<256x1xf32>
    %60 = arith.mulf %59, %58 : vector<256x1xf32>
    %61 = arith.addf %56, %60 : vector<256x1xf32>
    %cst_15 = arith.constant 0.000000e+00 : f32
    %62 = vector.broadcast %cst_15 : f32 to vector<256x1xf32>
    %63 = arith.select %7, %61, %62 : vector<256x1xi1>, vector<256x1xf32>
    %cst_16 = arith.constant dense<0.000000e+00> : vector<1xf32>
    %64 = vector.multi_reduction <add>, %63, %cst_16 [0] : vector<256x1xf32> to vector<1xf32>
    %65 = vector.shape_cast %64 : vector<1xf32> to vector<1x1xf32>
    %66 = vector.shape_cast %65 : vector<1x1xf32> to vector<1x1xf32>
    %67 = vector.broadcast %66 : vector<1x1xf32> to vector<8x128xf32>
    %c0_17 = arith.constant 0 : index
    %c0_18 = arith.constant 0 : index
    %68 = vector.load %arg3[%c0_17, %c0_18] : memref<8x128xf32, #tpu.memory_space<vmem>>, vector<8x128xf32>
    tpu.vector_store %arg3[%c0_17, %c0_18], %67 {strides = array<i32>} : memref<8x128xf32, #tpu.memory_space<vmem>>, vector<8x128xf32>,
    return
  }
  func.func @transform_0(%arg0: i32) -> (i32, i32) {
    %c0_i32 = arith.constant 0 : i32
    %c0_i32_0 = arith.constant 0 : i32
    return %arg0, %c0_i32 : i32, i32
  }
  func.func @transform_1(%arg0: i32) -> (i32, i32) {
    %c0_i32 = arith.constant 0 : i32
    %c0_i32_0 = arith.constant 0 : i32
    return %arg0, %c0_i32 : i32, i32
  }
  func.func @transform_2(%arg0: i32) -> (i32, i32) {
    %c0_i32 = arith.constant 0 : i32
    %c0_i32_0 = arith.constant 0 : i32
    return %arg0, %c0_i32 : i32, i32
  }
}

</mosaic_0001>

<llo_original>
// kernel: nfl_and_mae_loss.1
$region0: #{nfl_and_mae_loss.1}
  #allocation0 [shape = 'u32[]', space=smem, size = 0x4, offset = 0x4, fixed_abs, tag = 'smem constant byte address 0x4 - core index']
  #allocation1 [shape = 'u32[144,128]{1,0:T(1,128)}', space=vmem, size = 0x12000, scoped, tag = 'internal scratch']
  %s0 = inlined_call_operand.vmem [shape: f32[800,9], index: 0, kind: input, shape index: {}]
  %s1 = inlined_call_operand.vmem [shape: s32[800,1], index: 1, kind: input, shape index: {}]
  %s2 = inlined_call_operand.vmem [shape: f32[32,128], index: 2, kind: output, shape index: {}]
  %s3 = sld [smem:[#allocation0]]
  $region41: #{nfl_and_mae_loss.1} parent=0
    _
  %s5 = ssub.s32 1, %s3
  %s6 = scalar_select 0, %s5, %s3
  loop: start=0, step=1, limit=6
  $region2: #{nfl_and_mae_loss.1} parent=0 // loop_pre_header
    _
  $region3: #{nfl_and_mae_loss.1} parent=0 // loop_header
    %s8 = sphi 0, %s12
    %p9 = scmp.ge.s32.totalorder %s8, 6
    %s18 = sphi 0, %s20
    %s21 = sphi 0, %s18
    %s22 = sphi 0, %s21
    %s38 = sphi 0, %s22
    %s44 = sphi 0, %s46
    %s47 = sphi 0, %s44
    %s48 = sphi 0, %s47
    %s64 = sphi 0, %s48
    %s70 = sphi 0, %s72
    %s73 = sphi 0, %s70
    %s74 = sphi 0, %s73
    %s90 = sphi 0, %s74
  $region4: #{nfl_and_mae_loss.1} parent=0 // loop_header_branch
    %11 = sbr.rel (%p9) target = $region8
  $region5: #{nfl_and_mae_loss.1} parent=0 // loop_body
    %s13 = ssub.s32 %s8, 1
    %s14 = ssub.s32 %s8, 2
    %s15 = sadd.s32 %s8, 1
    %s16 = ssub.s32 %s8, %s15
    %p17 = scmp.eq.s32.totalorder %s16, 0
    %s19 = sadd.s32 %s18, 1
    %s20 = scalar_select %p17, %s18, %s19
    %p23 = pneg %p17
    %p24 = scmp.eq.s32.totalorder %s8, 3
    %p25 = por %p23, %p24
    %p26 = scmp.ne.s32.totalorder %s18, %s21
    %p27 = scmp.eq.s32.totalorder %s8, 0
    %p28 = por %p26, %p27
    %p29 = scmp.ne.s32.totalorder %s18, %s21
    %p30 = scmp.eq.s32.totalorder %s13, 3
    %p31 = por %p29, %p30
    %p32 = scmp.ne.s32.totalorder %s21, %s22
    %p33 = scmp.eq.s32.totalorder %s13, 0
    %p34 = por %p32, %p33
    %p35 = scmp.ne.s32.totalorder %s21, %s22
    %p36 = scmp.eq.s32.totalorder %s14, 3
    %p37 = por %p35, %p36
    %p39 = scmp.ne.s32.totalorder %s22, %s38
    %p40 = scmp.eq.s32.totalorder %s14, 0
    %p41 = por %p39, %p40
    %s42 = ssub.s32 %s8, %s15
    %p43 = scmp.eq.s32.totalorder %s42, 0
    %s45 = sadd.s32 %s44, 1
    %s46 = scalar_select %p43, %s44, %s45
    %p49 = pneg %p43
    %p50 = scmp.eq.s32.totalorder %s8, 3
    %p51 = por %p49, %p50
    %p52 = scmp.ne.s32.totalorder %s44, %s47
    %p53 = scmp.eq.s32.totalorder %s8, 0
    %p54 = por %p52, %p53
    %p55 = scmp.ne.s32.totalorder %s44, %s47
    %p56 = scmp.eq.s32.totalorder %s13, 3
    %p57 = por %p55, %p56
    %p58 = scmp.ne.s32.totalorder %s47, %s48
    %p59 = scmp.eq.s32.totalorder %s13, 0
    %p60 = por %p58, %p59
    %p61 = scmp.ne.s32.totalorder %s47, %s48
    %p62 = scmp.eq.s32.totalorder %s14, 3
    %p63 = por %p61, %p62
    %p65 = scmp.ne.s32.totalorder %s48, %s64
    %p66 = scmp.eq.s32.totalorder %s14, 0
    %p67 = por %p65, %p66
    %s68 = ssub.s32 %s8, %s15
    %p69 = scmp.eq.s32.totalorder %s68, 0
    %s71 = sadd.s32 %s70, 1
    %s72 = scalar_select %p69, %s70, %s71
    %p75 = pneg %p69
    %p76 = scmp.eq.s32.totalorder %s8, 3
    %p77 = por %p75, %p76
    %p78 = scmp.ne.s32.totalorder %s70, %s73
    %p79 = scmp.eq.s32.totalorder %s8, 0
    %p80 = por %p78, %p79
    %p81 = scmp.ne.s32.totalorder %s70, %s73
    %p82 = scmp.eq.s32.totalorder %s13, 3
    %p83 = por %p81, %p82
    %p84 = scmp.ne.s32.totalorder %s73, %s74
    %p85 = scmp.eq.s32.totalorder %s13, 0
    %p86 = por %p84, %p85
    %p87 = scmp.ne.s32.totalorder %s73, %s74
    %p88 = scmp.eq.s32.totalorder %s14, 3
    %p89 = por %p87, %p88
    %p91 = scmp.ne.s32.totalorder %s74, %s90
    %p92 = scmp.eq.s32.totalorder %s14, 0
    %p93 = por %p91, %p92
    %p94 = scmp.le.s32.totalorder 1, %s8
    %p95 = scmp.lt.s32.totalorder %s8, 5
    %p96 = pnand %p94, %p95
    %p97 = pneg %p96
    // Predicated region
    $region9: #{nfl_and_mae_loss.1} parent=5 // pred_check
      _
    $region10: #{nfl_and_mae_loss.1} parent=5 // pred_check_branch
      %99 = sbr.rel (%p96) target = $region12
    $region11: #{nfl_and_mae_loss.1} parent=5 // pred_region
      %s100 = ssub.s32 %s8, 1
    $region12: #{nfl_and_mae_loss.1} parent=5 // pred_fallthru
      _
    %p101 = scmp.lt.s32.totalorder %s8, 4
    // Predicated region
    $region13: #{nfl_and_mae_loss.1} parent=5 // pred_check
      %p102 = pneg %p101
    $region14: #{nfl_and_mae_loss.1} parent=5 // pred_check_branch
      %104 = sbr.rel (%p102) target = $region16
    $region15: #{nfl_and_mae_loss.1} parent=5 // pred_region
      // Predicated region
      $region17: #{nfl_and_mae_loss.1} parent=15 // pred_check
        %p105 = pneg %p28
      $region18: #{nfl_and_mae_loss.1} parent=15 // pred_check_branch
        %107 = sbr.rel (%p105) target = $region20
      $region19: #{nfl_and_mae_loss.1} parent=15 // pred_region
        %s108 = smul.u32 32, %s8
        %s109 = ssub.s32 100, %s108
        %p110 = scmp.lt.s32.totalorder %s109, 32
        %s111 = scalar_select %p110, %s109, 32
        %s112 = smul.u32 128, %s111
        %p113 = scmp.lt.s32.totalorder %s108, 99
        %s114 = scalar_select %p113, %s108, 99
        %s115 = smul.addr %s114, 8
        %s116 = scalar_lea.vmem %s0, %s115
        %s117 = smul.u32 32, %s8
        %s118 = ssub.s32 100, %s117
        %p119 = scmp.lt.s32.totalorder %s118, 32
        %s120 = scalar_select %p119, %s118, 32
        %s121 = smul.u32 128, %s120
      $region20: #{nfl_and_mae_loss.1} parent=15 // pred_fallthru
        _
      // Predicated region
      $region21: #{nfl_and_mae_loss.1} parent=15 // pred_check
        %p122 = pneg %p54
      $region22: #{nfl_and_mae_loss.1} parent=15 // pred_check_branch
        %124 = sbr.rel (%p122) target = $region24
      $region23: #{nfl_and_mae_loss.1} parent=15 // pred_region
        %s125 = smul.u32 32, %s8
        %s126 = ssub.s32 100, %s125
        %p127 = scmp.lt.s32.totalorder %s126, 32
        %s128 = scalar_select %p127, %s126, 32
        %s129 = smul.u32 128, %s128
        %p130 = scmp.lt.s32.totalorder %s125, 99
        %s131 = scalar_select %p130, %s125, 99
        %s132 = smul.addr %s131, 8
        %s133 = scalar_lea.vmem %s1, %s132
        %s134 = smul.u32 32, %s8
        %s135 = ssub.s32 100, %s134
        %p136 = scmp.lt.s32.totalorder %s135, 32
        %s137 = scalar_select %p136, %s135, 32
        %s138 = smul.u32 128, %s137
      $region24: #{nfl_and_mae_loss.1} parent=15 // pred_fallthru
        _
    $region16: #{nfl_and_mae_loss.1} parent=5 // pred_fallthru
      _
    %p139 = scmp.le.s32.totalorder 1, %s8
    %p140 = scmp.lt.s32.totalorder %s8, 5
    %p141 = pnand %p139, %p140
    %p142 = pneg %p141
    // Predicated region
    $region25: #{nfl_and_mae_loss.1} parent=5 // pred_check
      _
    $region26: #{nfl_and_mae_loss.1} parent=5 // pred_check_branch
      %144 = sbr.rel (%p141) target = $region28
    $region27: #{nfl_and_mae_loss.1} parent=5 // pred_region
      %s145 = ssub.s32 %s8, 1
      %s146 = smul.u32 32, %s13
      %s147 = ssub.s32 100, %s146
      %p148 = scmp.lt.s32.totalorder %s147, 32
      %s149 = scalar_select %p148, %s147, 32
      %s150 = smul.u32 128, %s149
      %p151 = scmp.lt.s32.totalorder %s146, 99
      %s152 = scalar_select %p151, %s146, 99
      %s153 = smul.addr %s152, 8
      %s154 = scalar_lea.vmem %s0, %s153
      %p155 = pneg %p34
      %p156 = pneg %p31
      %s157 = smul.u32 32, %s13
      %s158 = ssub.s32 100, %s157
      %p159 = scmp.lt.s32.totalorder %s158, 32
      %s160 = scalar_select %p159, %s158, 32
      %s161 = smul.u32 128, %s160
      %p162 = scmp.lt.s32.totalorder %s157, 99
      %s163 = scalar_select %p162, %s157, 99
      %s164 = smul.addr %s163, 8
      %s165 = scalar_lea.vmem %s1, %s164
      %p166 = pneg %p60
      %p167 = pneg %p57
      %p168 = pneg %p86
      %p169 = pneg %p83
      %p170 = scmp.lt.s32.totalorder %s13, 3
      %s171 = scalar_select %p170, %s13, 3
      %s172 = smul.addr %s171, 8
      %s173 = scalar_lea.vmem %s2, %s172
      %s174 = smul.u32 32, %s13
      %s175 = ssub.s32 100, %s174
      %p176 = scmp.lt.s32.totalorder %s175, 32
      %s177 = scalar_select %p176, %s175, 32
      %s178 = smul.u32 128, %s177
      %p179 = scmp.lt.s32.totalorder %s174, 99
      %s180 = scalar_select %p179, %s174, 99
      %s181 = smul.addr %s180, 8
      %s182 = scalar_lea.vmem %s0, %s181
      %s183 = smul.u32 32, %s13
      %s184 = ssub.s32 100, %s183
      %p185 = scmp.lt.s32.totalorder %s184, 32
      %s186 = scalar_select %p185, %s184, 32
      %s187 = smul.u32 128, %s186
      %s188 = smul.u32 32, %s13
      %s189 = ssub.s32 100, %s188
      %p190 = scmp.lt.s32.totalorder %s189, 32
      %s191 = scalar_select %p190, %s189, 32
      %s192 = smul.u32 128, %s191
      %p193 = scmp.lt.s32.totalorder %s188, 99
      %s194 = scalar_select %p193, %s188, 99
      %s195 = smul.addr %s194, 8
      %s196 = scalar_lea.vmem %s1, %s195
      %s197 = smul.u32 32, %s13
      %s198 = ssub.s32 100, %s197
      %p199 = scmp.lt.s32.totalorder %s198, 32
      %s200 = scalar_select %p199, %s198, 32
      %s201 = smul.u32 128, %s200
      %p202 = scmp.lt.s32.totalorder %s13, 3
      %s203 = scalar_select %p202, %s13, 3
      %s204 = smul.addr %s203, 8
      %s205 = scalar_lea.vmem %s2, %s204
      %v206 = vld [vmem:[%s182] sm:$0xff]
      %v207 = vld [vmem:[%s182 + $0x8] sm:$0xff]
      %v208 = vld [vmem:[%s182 + $0x10] sm:$0xff]
      %v209 = vld [vmem:[%s182 + $0x18] sm:$0xff]
      %v210 = vld [vmem:[%s182 + $0x20] sm:$0xff]
      %v211 = vld [vmem:[%s182 + $0x28] sm:$0xff]
      %v212 = vld [vmem:[%s182 + $0x30] sm:$0xff]
      %v213 = vld [vmem:[%s182 + $0x38] sm:$0xff]
      %v214 = vld [vmem:[%s182 + $0x40] sm:$0xff]
      %v215 = vld [vmem:[%s182 + $0x48] sm:$0xff]
      %v216 = vld [vmem:[%s182 + $0x50] sm:$0xff]
      %v217 = vld [vmem:[%s182 + $0x58] sm:$0xff]
      %v218 = vld [vmem:[%s182 + $0x60] sm:$0xff]
      %v219 = vld [vmem:[%s182 + $0x68] sm:$0xff]
      %v220 = vld [vmem:[%s182 + $0x70] sm:$0xff]
      %v221 = vld [vmem:[%s182 + $0x78] sm:$0xff]
      %v222 = vld [vmem:[%s182 + $0x80] sm:$0xff]
      %v223 = vld [vmem:[%s182 + $0x88] sm:$0xff]
      %v224 = vld [vmem:[%s182 + $0x90] sm:$0xff]
      %v225 = vld [vmem:[%s182 + $0x98] sm:$0xff]
      %v226 = vld [vmem:[%s182 + $0xa0] sm:$0xff]
      %v227 = vld [vmem:[%s182 + $0xa8] sm:$0xff]
      %v228 = vld [vmem:[%s182 + $0xb0] sm:$0xff]
      %v229 = vld [vmem:[%s182 + $0xb8] sm:$0xff]
      %v230 = vld [vmem:[%s182 + $0xc0] sm:$0xff]
      %v231 = vld [vmem:[%s182 + $0xc8] sm:$0xff]
      %v232 = vld [vmem:[%s182 + $0xd0] sm:$0xff]
      %v233 = vld [vmem:[%s182 + $0xd8] sm:$0xff]
      %v234 = vld [vmem:[%s182 + $0xe0] sm:$0xff]
      %v235 = vld [vmem:[%s182 + $0xe8] sm:$0xff]
      %v236 = vld [vmem:[%s182 + $0xf0] sm:$0xff]
      %v237 = vld [vmem:[%s182 + $0xf8] sm:$0xff]
      %v238 = vld [vmem:[%s196] sm:$0xff]
      %v239 = vld [vmem:[%s196 + $0x8] sm:$0xff]
      %v240 = vld [vmem:[%s196 + $0x10] sm:$0xff]
      %v241 = vld [vmem:[%s196 + $0x18] sm:$0xff]
      %v242 = vld [vmem:[%s196 + $0x20] sm:$0xff]
      %v243 = vld [vmem:[%s196 + $0x28] sm:$0xff]
      %v244 = vld [vmem:[%s196 + $0x30] sm:$0xff]
      %v245 = vld [vmem:[%s196 + $0x38] sm:$0xff]
      %v246 = vld [vmem:[%s196 + $0x40] sm:$0xff]
      %v247 = vld [vmem:[%s196 + $0x48] sm:$0xff]
      %v248 = vld [vmem:[%s196 + $0x50] sm:$0xff]
      %v249 = vld [vmem:[%s196 + $0x58] sm:$0xff]
      %v250 = vld [vmem:[%s196 + $0x60] sm:$0xff]
      %v251 = vld [vmem:[%s196 + $0x68] sm:$0xff]
      %v252 = vld [vmem:[%s196 + $0x70] sm:$0xff]
      %v253 = vld [vmem:[%s196 + $0x78] sm:$0xff]
      %v254 = vld [vmem:[%s196 + $0x80] sm:$0xff]
      %v255 = vld [vmem:[%s196 + $0x88] sm:$0xff]
      %v256 = vld [vmem:[%s196 + $0x90] sm:$0xff]
      %v257 = vld [vmem:[%s196 + $0x98] sm:$0xff]
      %v258 = vld [vmem:[%s196 + $0xa0] sm:$0xff]
      %v259 = vld [vmem:[%s196 + $0xa8] sm:$0xff]
      %v260 = vld [vmem:[%s196 + $0xb0] sm:$0xff]
      %v261 = vld [vmem:[%s196 + $0xb8] sm:$0xff]
      %v262 = vld [vmem:[%s196 + $0xc0] sm:$0xff]
      %v263 = vld [vmem:[%s196 + $0xc8] sm:$0xff]
      %v264 = vld [vmem:[%s196 + $0xd0] sm:$0xff]
      %v265 = vld [vmem:[%s196 + $0xd8] sm:$0xff]
      %v266 = vld [vmem:[%s196 + $0xe0] sm:$0xff]
      %v267 = vld [vmem:[%s196 + $0xe8] sm:$0xff]
      %v268 = vld [vmem:[%s196 + $0xf0] sm:$0xff]
      %v269 = vld [vmem:[%s196 + $0xf8] sm:$0xff]
      %v270 = vlaneseq
      %v271 = vshrl.u32 %v270, 7
      %v272 = vadd.s32 %v271, 8
      %v273 = vadd.s32 %v271, 16
      %v274 = vadd.s32 %v271, 24
      %v275 = vadd.s32 %v271, 32
      %v276 = vadd.s32 %v271, 40
      %v277 = vadd.s32 %v271, 48
      %v278 = vadd.s32 %v271, 56
      %v279 = vadd.s32 %v271, 64
      %v280 = vadd.s32 %v271, 72
      %v281 = vadd.s32 %v271, 80
      %v282 = vadd.s32 %v271, 88
      %v283 = vadd.s32 %v271, 96
      %v284 = vadd.s32 %v271, 104
      %v285 = vadd.s32 %v271, 112
      %v286 = vadd.s32 %v271, 120
      %v287 = vadd.s32 %v271, 128
      %v288 = vadd.s32 %v271, 136
      %v289 = vadd.s32 %v271, 144
      %v290 = vadd.s32 %v271, 152
      %v291 = vadd.s32 %v271, 160
      %v292 = vadd.s32 %v271, 168
      %v293 = vadd.s32 %v271, 176
      %v294 = vadd.s32 %v271, 184
      %v295 = vadd.s32 %v271, 192
      %v296 = vadd.s32 %v271, 200
      %v297 = vadd.s32 %v271, 208
      %v298 = vadd.s32 %v271, 216
      %v299 = vadd.s32 %v271, 224
      %v300 = vadd.s32 %v271, 232
      %v301 = vadd.s32 %v271, 240
      %v302 = vadd.s32 %v271, 248
      %s303 = smul.u32 %s13, 256
      %v304 = vstv %s303
      %v305 = vadd.s32 %v271, %v304
      %v306 = vadd.s32 %v272, %v304
      %v307 = vadd.s32 %v273, %v304
      %v308 = vadd.s32 %v274, %v304
      %v309 = vadd.s32 %v275, %v304
      %v310 = vadd.s32 %v276, %v304
      %v311 = vadd.s32 %v277, %v304
      %v312 = vadd.s32 %v278, %v304
      %v313 = vadd.s32 %v279, %v304
      %v314 = vadd.s32 %v280, %v304
      %v315 = vadd.s32 %v281, %v304
      %v316 = vadd.s32 %v282, %v304
      %v317 = vadd.s32 %v283, %v304
      %v318 = vadd.s32 %v284, %v304
      %v319 = vadd.s32 %v285, %v304
      %v320 = vadd.s32 %v286, %v304
      %v321 = vadd.s32 %v287, %v304
      %v322 = vadd.s32 %v288, %v304
      %v323 = vadd.s32 %v289, %v304
      %v324 = vadd.s32 %v290, %v304
      %v325 = vadd.s32 %v291, %v304
      %v326 = vadd.s32 %v292, %v304
      %v327 = vadd.s32 %v293, %v304
      %v328 = vadd.s32 %v294, %v304
      %v329 = vadd.s32 %v295, %v304
      %v330 = vadd.s32 %v296, %v304
      %v331 = vadd.s32 %v297, %v304
      %v332 = vadd.s32 %v298, %v304
      %v333 = vadd.s32 %v299, %v304
      %v334 = vadd.s32 %v300, %v304
      %v335 = vadd.s32 %v301, %v304
      %v336 = vadd.s32 %v302, %v304
      %vm337 = vcmp.lt.s32.totalorder %v305, 800
      %vm338 = vcmp.lt.s32.totalorder %v306, 800
      %vm339 = vcmp.lt.s32.totalorder %v307, 800
      %vm340 = vcmp.lt.s32.totalorder %v308, 800
      %vm341 = vcmp.lt.s32.totalorder %v309, 800
      %vm342 = vcmp.lt.s32.totalorder %v310, 800
      %vm343 = vcmp.lt.s32.totalorder %v311, 800
      %vm344 = vcmp.lt.s32.totalorder %v312, 800
      %vm345 = vcmp.lt.s32.totalorder %v313, 800
      %vm346 = vcmp.lt.s32.totalorder %v314, 800
      %vm347 = vcmp.lt.s32.totalorder %v315, 800
      %vm348 = vcmp.lt.s32.totalorder %v316, 800
      %vm349 = vcmp.lt.s32.totalorder %v317, 800
      %vm350 = vcmp.lt.s32.totalorder %v318, 800
      %vm351 = vcmp.lt.s32.totalorder %v319, 800
      %vm352 = vcmp.lt.s32.totalorder %v320, 800
      %vm353 = vcmp.lt.s32.totalorder %v321, 800
      %vm354 = vcmp.lt.s32.totalorder %v322, 800
      %vm355 = vcmp.lt.s32.totalorder %v323, 800
      %vm356 = vcmp.lt.s32.totalorder %v324, 800
      %vm357 = vcmp.lt.s32.totalorder %v325, 800
      %vm358 = vcmp.lt.s32.totalorder %v326, 800
      %vm359 = vcmp.lt.s32.totalorder %v327, 800
      %vm360 = vcmp.lt.s32.totalorder %v328, 800
      %vm361 = vcmp.lt.s32.totalorder %v329, 800
      %vm362 = vcmp.lt.s32.totalorder %v330, 800
      %vm363 = vcmp.lt.s32.totalorder %v331, 800
      %vm364 = vcmp.lt.s32.totalorder %v332, 800
      %vm365 = vcmp.lt.s32.totalorder %v333, 800
      %vm366 = vcmp.lt.s32.totalorder %v334, 800
      %vm367 = vcmp.lt.s32.totalorder %v335, 800
      %vm368 = vcmp.lt.s32.totalorder %v336, 800
      %vm369 = vcmask 72704
      %v370 = vsel %vm369, %v206, -inf
      %371 = vmax.xlane.f32.xlu0 %v370
      %v372 = vpop.xlane.xlu0 %371
      %v373 = vsel %vm369, %v207, -inf
      %374 = vmax.xlane.f32.xlu0 %v373
      %v375 = vpop.xlane.xlu0 %374
      %v376 = vsel %vm369, %v208, -inf
      %377 = vmax.xlane.f32.xlu0 %v376
      %v378 = vpop.xlane.xlu0 %377
      %v379 = vsel %vm369, %v209, -inf
      %380 = vmax.xlane.f32.xlu0 %v379
      %v381 = vpop.xlane.xlu0 %380
      %v382 = vsel %vm369, %v210, -inf
      %383 = vmax.xlane.f32.xlu0 %v382
      %v384 = vpop.xlane.xlu0 %383
      %v385 = vsel %vm369, %v211, -inf
      %386 = vmax.xlane.f32.xlu0 %v385
      %v387 = vpop.xlane.xlu0 %386
      %v388 = vsel %vm369, %v212, -inf
      %389 = vmax.xlane.f32.xlu0 %v388
      %v390 = vpop.xlane.xlu0 %389
      %v391 = vsel %vm369, %v213, -inf
      %392 = vmax.xlane.f32.xlu0 %v391
      %v393 = vpop.xlane.xlu0 %392
      %v394 = vsel %vm369, %v214, -inf
      %395 = vmax.xlane.f32.xlu0 %v394
      %v396 = vpop.xlane.xlu0 %395
      %v397 = vsel %vm369, %v215, -inf
      %398 = vmax.xlane.f32.xlu0 %v397
      %v399 = vpop.xlane.xlu0 %398
      %v400 = vsel %vm369, %v216, -inf
      %401 = vmax.xlane.f32.xlu0 %v400
      %v402 = vpop.xlane.xlu0 %401
      %v403 = vsel %vm369, %v217, -inf
      %404 = vmax.xlane.f32.xlu0 %v403
      %v405 = vpop.xlane.xlu0 %404
      %v406 = vsel %vm369, %v218, -inf
      %407 = vmax.xlane.f32.xlu0 %v406
      %v408 = vpop.xlane.xlu0 %407
      %v409 = vsel %vm369, %v219, -inf
      %410 = vmax.xlane.f32.xlu0 %v409
      %v411 = vpop.xlane.xlu0 %410
      %v412 = vsel %vm369, %v220, -inf
      %413 = vmax.xlane.f32.xlu0 %v412
      %v414 = vpop.xlane.xlu0 %413
      %v415 = vsel %vm369, %v221, -inf
      %416 = vmax.xlane.f32.xlu0 %v415
      %v417 = vpop.xlane.xlu0 %416
      %v418 = vsel %vm369, %v222, -inf
      %419 = vmax.xlane.f32.xlu0 %v418
      %v420 = vpop.xlane.xlu0 %419
      %v421 = vsel %vm369, %v223, -inf
      %422 = vmax.xlane.f32.xlu0 %v421
      %v423 = vpop.xlane.xlu0 %422
      %v424 = vsel %vm369, %v224, -inf
      %425 = vmax.xlane.f32.xlu0 %v424
      %v426 = vpop.xlane.xlu0 %425
      %v427 = vsel %vm369, %v225, -inf
      %428 = vmax.xlane.f32.xlu0 %v427
      %v429 = vpop.xlane.xlu0 %428
      %v430 = vsel %vm369, %v226, -inf
      %431 = vmax.xlane.f32.xlu0 %v430
      %v432 = vpop.xlane.xlu0 %431
      %v433 = vsel %vm369, %v227, -inf
      %434 = vmax.xlane.f32.xlu0 %v433
      %v435 = vpop.xlane.xlu0 %434
      %v436 = vsel %vm369, %v228, -inf
      %437 = vmax.xlane.f32.xlu0 %v436
      %v438 = vpop.xlane.xlu0 %437
      %v439 = vsel %vm369, %v229, -inf
      %440 = vmax.xlane.f32.xlu0 %v439
      %v441 = vpop.xlane.xlu0 %440
      %v442 = vsel %vm369, %v230, -inf
      %443 = vmax.xlane.f32.xlu0 %v442
      %v444 = vpop.xlane.xlu0 %443
      %v445 = vsel %vm369, %v231, -inf
      %446 = vmax.xlane.f32.xlu0 %v445
      %v447 = vpop.xlane.xlu0 %446
      %v448 = vsel %vm369, %v232, -inf
      %449 = vmax.xlane.f32.xlu0 %v448
      %v450 = vpop.xlane.xlu0 %449
      %v451 = vsel %vm369, %v233, -inf
      %452 = vmax.xlane.f32.xlu0 %v451
      %v453 = vpop.xlane.xlu0 %452
      %v454 = vsel %vm369, %v234, -inf
      %455 = vmax.xlane.f32.xlu0 %v454
      %v456 = vpop.xlane.xlu0 %455
      %v457 = vsel %vm369, %v235, -inf
      %458 = vmax.xlane.f32.xlu0 %v457
      %v459 = vpop.xlane.xlu0 %458
      %v460 = vsel %vm369, %v236, -inf
      %461 = vmax.xlane.f32.xlu0 %v460
      %v462 = vpop.xlane.xlu0 %461
      %v463 = vsel %vm369, %v237, -inf
      %464 = vmax.xlane.f32.xlu0 %v463
      %v465 = vpop.xlane.xlu0 %464
      %v466 = vsub.f32 %v206, %v372
      %v467 = vsub.f32 %v207, %v375
      %v468 = vsub.f32 %v208, %v378
      %v469 = vsub.f32 %v209, %v381
      %v470 = vsub.f32 %v210, %v384
      %v471 = vsub.f32 %v211, %v387
      %v472 = vsub.f32 %v212, %v390
      %v473 = vsub.f32 %v213, %v393
      %v474 = vsub.f32 %v214, %v396
      %v475 = vsub.f32 %v215, %v399
      %v476 = vsub.f32 %v216, %v402
      %v477 = vsub.f32 %v217, %v405
      %v478 = vsub.f32 %v218, %v408
      %v479 = vsub.f32 %v219, %v411
      %v480 = vsub.f32 %v220, %v414
      %v481 = vsub.f32 %v221, %v417
      %v482 = vsub.f32 %v222, %v420
      %v483 = vsub.f32 %v223, %v423
      %v484 = vsub.f32 %v224, %v426
      %v485 = vsub.f32 %v225, %v429
      %v486 = vsub.f32 %v226, %v432
      %v487 = vsub.f32 %v227, %v435
      %v488 = vsub.f32 %v228, %v438
      %v489 = vsub.f32 %v229, %v441
      %v490 = vsub.f32 %v230, %v444
      %v491 = vsub.f32 %v231, %v447
      %v492 = vsub.f32 %v232, %v450
      %v493 = vsub.f32 %v233, %v453
      %v494 = vsub.f32 %v234, %v456
      %v495 = vsub.f32 %v235, %v459
      %v496 = vsub.f32 %v236, %v462
      %v497 = vsub.f32 %v237, %v465
      %v498 = vmul.f32 %v466, 1.442695
      %v499 = vpow.pop %v498
      %v500 = vmul.f32 %v467, 1.442695
      %v501 = vpow.pop %v500
      %v502 = vmul.f32 %v468, 1.442695
      %v503 = vpow.pop %v502
      %v504 = vmul.f32 %v469, 1.442695
      %v505 = vpow.pop %v504
      %v506 = vmul.f32 %v470, 1.442695
      %v507 = vpow.pop %v506
      %v508 = vmul.f32 %v471, 1.442695
      %v509 = vpow.pop %v508
      %v510 = vmul.f32 %v472, 1.442695
      %v511 = vpow.pop %v510
      %v512 = vmul.f32 %v473, 1.442695
      %v513 = vpow.pop %v512
      %v514 = vmul.f32 %v474, 1.442695
      %v515 = vpow.pop %v514
      %v516 = vmul.f32 %v475, 1.442695
      %v517 = vpow.pop %v516
      %v518 = vmul.f32 %v476, 1.442695
      %v519 = vpow.pop %v518
      %v520 = vmul.f32 %v477, 1.442695
      %v521 = vpow.pop %v520
      %v522 = vmul.f32 %v478, 1.442695
      %v523 = vpow.pop %v522
      %v524 = vmul.f32 %v479, 1.442695
      %v525 = vpow.pop %v524
      %v526 = vmul.f32 %v480, 1.442695
      %v527 = vpow.pop %v526
      %v528 = vmul.f32 %v481, 1.442695
      %v529 = vpow.pop %v528
      %v530 = vmul.f32 %v482, 1.442695
      %v531 = vpow.pop %v530
      %v532 = vmul.f32 %v483, 1.442695
      %v533 = vpow.pop %v532
      %v534 = vmul.f32 %v484, 1.442695
      %v535 = vpow.pop %v534
      %v536 = vmul.f32 %v485, 1.442695
      %v537 = vpow.pop %v536
      %v538 = vmul.f32 %v486, 1.442695
      %v539 = vpow.pop %v538
      %v540 = vmul.f32 %v487, 1.442695
      %v541 = vpow.pop %v540
      %v542 = vmul.f32 %v488, 1.442695
      %v543 = vpow.pop %v542
      %v544 = vmul.f32 %v489, 1.442695
      %v545 = vpow.pop %v544
      %v546 = vmul.f32 %v490, 1.442695
      %v547 = vpow.pop %v546
      %v548 = vmul.f32 %v491, 1.442695
      %v549 = vpow.pop %v548
      %v550 = vmul.f32 %v492, 1.442695
      %v551 = vpow.pop %v550
      %v552 = vmul.f32 %v493, 1.442695
      %v553 = vpow.pop %v552
      %v554 = vmul.f32 %v494, 1.442695
      %v555 = vpow.pop %v554
      %v556 = vmul.f32 %v495, 1.442695
      %v557 = vpow.pop %v556
      %v558 = vmul.f32 %v496, 1.442695
      %v559 = vpow.pop %v558
      %v560 = vmul.f32 %v497, 1.442695
      %v561 = vpow.pop %v560
      %v562 = vsel %vm369, %v499, 0.0
      %563 = vadd.xlane.f32.xlu0 %v562
      %v564 = vpop.xlane.xlu0 %563
      %v565 = vsel %vm369, %v501, 0.0
      %566 = vadd.xlane.f32.xlu0 %v565
      %v567 = vpop.xlane.xlu0 %566
      %v568 = vsel %vm369, %v503, 0.0
      %569 = vadd.xlane.f32.xlu0 %v568
      %v570 = vpop.xlane.xlu0 %569
      %v571 = vsel %vm369, %v505, 0.0
      %572 = vadd.xlane.f32.xlu0 %v571
      %v573 = vpop.xlane.xlu0 %572
      %v574 = vsel %vm369, %v507, 0.0
      %575 = vadd.xlane.f32.xlu0 %v574
      %v576 = vpop.xlane.xlu0 %575
      %v577 = vsel %vm369, %v509, 0.0
      %578 = vadd.xlane.f32.xlu0 %v577
      %v579 = vpop.xlane.xlu0 %578
      %v580 = vsel %vm369, %v511, 0.0
      %581 = vadd.xlane.f32.xlu0 %v580
      %v582 = vpop.xlane.xlu0 %581
      %v583 = vsel %vm369, %v513, 0.0
      %584 = vadd.xlane.f32.xlu0 %v583
      %v585 = vpop.xlane.xlu0 %584
      %v586 = vsel %vm369, %v515, 0.0
      %587 = vadd.xlane.f32.xlu0 %v586
      %v588 = vpop.xlane.xlu0 %587
      %v589 = vsel %vm369, %v517, 0.0
      %590 = vadd.xlane.f32.xlu0 %v589
      %v591 = vpop.xlane.xlu0 %590
      %v592 = vsel %vm369, %v519, 0.0
      %593 = vadd.xlane.f32.xlu0 %v592
      %v594 = vpop.xlane.xlu0 %593
      %v595 = vsel %vm369, %v521, 0.0
      %596 = vadd.xlane.f32.xlu0 %v595
      %v597 = vpop.xlane.xlu0 %596
      %v598 = vsel %vm369, %v523, 0.0
      %599 = vadd.xlane.f32.xlu0 %v598
      %v600 = vpop.xlane.xlu0 %599
      %v601 = vsel %vm369, %v525, 0.0
      %602 = vadd.xlane.f32.xlu0 %v601
      %v603 = vpop.xlane.xlu0 %602
      %v604 = vsel %vm369, %v527, 0.0
      %605 = vadd.xlane.f32.xlu0 %v604
      %v606 = vpop.xlane.xlu0 %605
      %v607 = vsel %vm369, %v529, 0.0
      %608 = vadd.xlane.f32.xlu0 %v607
      %v609 = vpop.xlane.xlu0 %608
      %v610 = vsel %vm369, %v531, 0.0
      %611 = vadd.xlane.f32.xlu0 %v610
      %v612 = vpop.xlane.xlu0 %611
      %v613 = vsel %vm369, %v533, 0.0
      %614 = vadd.xlane.f32.xlu0 %v613
      %v615 = vpop.xlane.xlu0 %614
      %v616 = vsel %vm369, %v535, 0.0
      %617 = vadd.xlane.f32.xlu0 %v616
      %v618 = vpop.xlane.xlu0 %617
      %v619 = vsel %vm369, %v537, 0.0
      %620 = vadd.xlane.f32.xlu0 %v619
      %v621 = vpop.xlane.xlu0 %620
      %v622 = vsel %vm369, %v539, 0.0
      %623 = vadd.xlane.f32.xlu0 %v622
      %v624 = vpop.xlane.xlu0 %623
      %v625 = vsel %vm369, %v541, 0.0
      %626 = vadd.xlane.f32.xlu0 %v625
      %v627 = vpop.xlane.xlu0 %626
      %v628 = vsel %vm369, %v543, 0.0
      %629 = vadd.xlane.f32.xlu0 %v628
      %v630 = vpop.xlane.xlu0 %629
      %v631 = vsel %vm369, %v545, 0.0
      %632 = vadd.xlane.f32.xlu0 %v631
      %v633 = vpop.xlane.xlu0 %632
      %v634 = vsel %vm369, %v547, 0.0
      %635 = vadd.xlane.f32.xlu0 %v634
      %v636 = vpop.xlane.xlu0 %635
      %v637 = vsel %vm369, %v549, 0.0
      %638 = vadd.xlane.f32.xlu0 %v637
      %v639 = vpop.xlane.xlu0 %638
      %v640 = vsel %vm369, %v551, 0.0
      %641 = vadd.xlane.f32.xlu0 %v640
      %v642 = vpop.xlane.xlu0 %641
      %v643 = vsel %vm369, %v553, 0.0
      %644 = vadd.xlane.f32.xlu0 %v643
      %v645 = vpop.xlane.xlu0 %644
      %v646 = vsel %vm369, %v555, 0.0
      %647 = vadd.xlane.f32.xlu0 %v646
      %v648 = vpop.xlane.xlu0 %647
      %v649 = vsel %vm369, %v557, 0.0
      %650 = vadd.xlane.f32.xlu0 %v649
      %v651 = vpop.xlane.xlu0 %650
      %v652 = vsel %vm369, %v559, 0.0
      %653 = vadd.xlane.f32.xlu0 %v652
      %v654 = vpop.xlane.xlu0 %653
      %v655 = vsel %vm369, %v561, 0.0
      %656 = vadd.xlane.f32.xlu0 %v655
      %v657 = vpop.xlane.xlu0 %656
      %v658 = vrcp.pop %v564
      %v659 = vrcp.pop %v567
      %v660 = vrcp.pop %v570
      %v661 = vrcp.pop %v573
      %v662 = vrcp.pop %v576
      %v663 = vrcp.pop %v579
      %v664 = vrcp.pop %v582
      %v665 = vrcp.pop %v585
      %v666 = vrcp.pop %v588
      %v667 = vrcp.pop %v591
      %v668 = vrcp.pop %v594
      %v669 = vrcp.pop %v597
      %v670 = vrcp.pop %v600
      %v671 = vrcp.pop %v603
      %v672 = vrcp.pop %v606
      %v673 = vrcp.pop %v609
      %v674 = vrcp.pop %v612
      %v675 = vrcp.pop %v615
      %v676 = vrcp.pop %v618
      %v677 = vrcp.pop %v621
      %v678 = vrcp.pop %v624
      %v679 = vrcp.pop %v627
      %v680 = vrcp.pop %v630
      %v681 = vrcp.pop %v633
      %v682 = vrcp.pop %v636
      %v683 = vrcp.pop %v639
      %v684 = vrcp.pop %v642
      %v685 = vrcp.pop %v645
      %v686 = vrcp.pop %v648
      %v687 = vrcp.pop %v651
      %v688 = vrcp.pop %v654
      %v689 = vrcp.pop %v657
      %v690 = vlog2.pop %v564
      %v691 = vmul.f32 %v690, 0.6931472
      %v692 = vlog2.pop %v567
      %v693 = vmul.f32 %v692, 0.6931472
      %v694 = vlog2.pop %v570
      %v695 = vmul.f32 %v694, 0.6931472
      %v696 = vlog2.pop %v573
      %v697 = vmul.f32 %v696, 0.6931472
      %v698 = vlog2.pop %v576
      %v699 = vmul.f32 %v698, 0.6931472
      %v700 = vlog2.pop %v579
      %v701 = vmul.f32 %v700, 0.6931472
      %v702 = vlog2.pop %v582
      %v703 = vmul.f32 %v702, 0.6931472
      %v704 = vlog2.pop %v585
      %v705 = vmul.f32 %v704, 0.6931472
      %v706 = vlog2.pop %v588
      %v707 = vmul.f32 %v706, 0.6931472
      %v708 = vlog2.pop %v591
      %v709 = vmul.f32 %v708, 0.6931472
      %v710 = vlog2.pop %v594
      %v711 = vmul.f32 %v710, 0.6931472
      %v712 = vlog2.pop %v597
      %v713 = vmul.f32 %v712, 0.6931472
      %v714 = vlog2.pop %v600
      %v715 = vmul.f32 %v714, 0.6931472
      %v716 = vlog2.pop %v603
      %v717 = vmul.f32 %v716, 0.6931472
      %v718 = vlog2.pop %v606
      %v719 = vmul.f32 %v718, 0.6931472
      %v720 = vlog2.pop %v609
      %v721 = vmul.f32 %v720, 0.6931472
      %v722 = vlog2.pop %v612
      %v723 = vmul.f32 %v722, 0.6931472
      %v724 = vlog2.pop %v615
      %v725 = vmul.f32 %v724, 0.6931472
      %v726 = vlog2.pop %v618
      %v727 = vmul.f32 %v726, 0.6931472
      %v728 = vlog2.pop %v621
      %v729 = vmul.f32 %v728, 0.6931472
      %v730 = vlog2.pop %v624
      %v731 = vmul.f32 %v730, 0.6931472
      %v732 = vlog2.pop %v627
      %v733 = vmul.f32 %v732, 0.6931472
      %v734 = vlog2.pop %v630
      %v735 = vmul.f32 %v734, 0.6931472
      %v736 = vlog2.pop %v633
      %v737 = vmul.f32 %v736, 0.6931472
      %v738 = vlog2.pop %v636
      %v739 = vmul.f32 %v738, 0.6931472
      %v740 = vlog2.pop %v639
      %v741 = vmul.f32 %v740, 0.6931472
      %v742 = vlog2.pop %v642
      %v743 = vmul.f32 %v742, 0.6931472
      %v744 = vlog2.pop %v645
      %v745 = vmul.f32 %v744, 0.6931472
      %v746 = vlog2.pop %v648
      %v747 = vmul.f32 %v746, 0.6931472
      %v748 = vlog2.pop %v651
      %v749 = vmul.f32 %v748, 0.6931472
      %v750 = vlog2.pop %v654
      %v751 = vmul.f32 %v750, 0.6931472
      %v752 = vlog2.pop %v657
      %v753 = vmul.f32 %v752, 0.6931472
      %v754 = vsub.f32 %v466, %v691
      %v755 = vsub.f32 %v467, %v693
      %v756 = vsub.f32 %v468, %v695
      %v757 = vsub.f32 %v469, %v697
      %v758 = vsub.f32 %v470, %v699
      %v759 = vsub.f32 %v471, %v701
      %v760 = vsub.f32 %v472, %v703
      %v761 = vsub.f32 %v473, %v705
      %v762 = vsub.f32 %v474, %v707
      %v763 = vsub.f32 %v475, %v709
      %v764 = vsub.f32 %v476, %v711
      %v765 = vsub.f32 %v477, %v713
      %v766 = vsub.f32 %v478, %v715
      %v767 = vsub.f32 %v479, %v717
      %v768 = vsub.f32 %v480, %v719
      %v769 = vsub.f32 %v481, %v721
      %v770 = vsub.f32 %v482, %v723
      %v771 = vsub.f32 %v483, %v725
      %v772 = vsub.f32 %v484, %v727
      %v773 = vsub.f32 %v485, %v729
      %v774 = vsub.f32 %v486, %v731
      %v775 = vsub.f32 %v487, %v733
      %v776 = vsub.f32 %v488, %v735
      %v777 = vsub.f32 %v489, %v737
      %v778 = vsub.f32 %v490, %v739
      %v779 = vsub.f32 %v491, %v741
      %v780 = vsub.f32 %v492, %v743
      %v781 = vsub.f32 %v493, %v745
      %v782 = vsub.f32 %v494, %v747
      %v783 = vsub.f32 %v495, %v749
      %v784 = vsub.f32 %v496, %v751
      %v785 = vsub.f32 %v497, %v753
      %v786 = vsub.f32 %v564, %v499
      %v787 = vsub.f32 %v567, %v501
      %v788 = vsub.f32 %v570, %v503
      %v789 = vsub.f32 %v573, %v505
      %v790 = vsub.f32 %v576, %v507
      %v791 = vsub.f32 %v579, %v509
      %v792 = vsub.f32 %v582, %v511
      %v793 = vsub.f32 %v585, %v513
      %v794 = vsub.f32 %v588, %v515
      %v795 = vsub.f32 %v591, %v517
      %v796 = vsub.f32 %v594, %v519
      %v797 = vsub.f32 %v597, %v521
      %v798 = vsub.f32 %v600, %v523
      %v799 = vsub.f32 %v603, %v525
      %v800 = vsub.f32 %v606, %v527
      %v801 = vsub.f32 %v609, %v529
      %v802 = vsub.f32 %v612, %v531
      %v803 = vsub.f32 %v615, %v533
      %v804 = vsub.f32 %v618, %v535
      %v805 = vsub.f32 %v621, %v537
      %v806 = vsub.f32 %v624, %v539
      %v807 = vsub.f32 %v627, %v541
      %v808 = vsub.f32 %v630, %v543
      %v809 = vsub.f32 %v633, %v545
      %v810 = vsub.f32 %v636, %v547
      %v811 = vsub.f32 %v639, %v549
      %v812 = vsub.f32 %v642, %v551
      %v813 = vsub.f32 %v645, %v553
      %v814 = vsub.f32 %v648, %v555
      %v815 = vsub.f32 %v651, %v557
      %v816 = vsub.f32 %v654, %v559
      %v817 = vsub.f32 %v657, %v561
      %v818 = vmul.f32 %v786, %v658
      %v819 = vmul.f32 %v787, %v659
      %v820 = vmul.f32 %v788, %v660
      %v821 = vmul.f32 %v789, %v661
      %v822 = vmul.f32 %v790, %v662
      %v823 = vmul.f32 %v791, %v663
      %v824 = vmul.f32 %v792, %v664
      %v825 = vmul.f32 %v793, %v665
      %v826 = vmul.f32 %v794, %v666
      %v827 = vmul.f32 %v795, %v667
      %v828 = vmul.f32 %v796, %v668
      %v829 = vmul.f32 %v797, %v669
      %v830 = vmul.f32 %v798, %v670
      %v831 = vmul.f32 %v799, %v671
      %v832 = vmul.f32 %v800, %v672
      %v833 = vmul.f32 %v801, %v673
      %v834 = vmul.f32 %v802, %v674
      %v835 = vmul.f32 %v803, %v675
      %v836 = vmul.f32 %v804, %v676
      %v837 = vmul.f32 %v805, %v677
      %v838 = vmul.f32 %v806, %v678
      %v839 = vmul.f32 %v807, %v679
      %v840 = vmul.f32 %v808, %v680
      %v841 = vmul.f32 %v809, %v681
      %v842 = vmul.f32 %v810, %v682
      %v843 = vmul.f32 %v811, %v683
      %v844 = vmul.f32 %v812, %v684
      %v845 = vmul.f32 %v813, %v685
      %v846 = vmul.f32 %v814, %v686
      %v847 = vmul.f32 %v815, %v687
      %v848 = vmul.f32 %v816, %v688
      %v849 = vmul.f32 %v817, %v689
      %v850 = vrsqrt.pop %v818
      %v851 = vmul.f32 %v818, %v850
      %vm852 = vcmp.eq.f32.partialorder %v818, inf
      %v853 = vsel %vm852, %v818, %v851
      %vm854 = vcmp.eq.f32.partialorder %v818, 0.0
      %v855 = vand.u32 %v818, 2147483648
      %v856 = vsel %vm854, %v855, %v853
      %v857 = vrsqrt.pop %v819
      %v858 = vmul.f32 %v819, %v857
      %vm859 = vcmp.eq.f32.partialorder %v819, inf
      %v860 = vsel %vm859, %v819, %v858
      %vm861 = vcmp.eq.f32.partialorder %v819, 0.0
      %v862 = vand.u32 %v819, 2147483648
      %v863 = vsel %vm861, %v862, %v860
      %v864 = vrsqrt.pop %v820
      %v865 = vmul.f32 %v820, %v864
      %vm866 = vcmp.eq.f32.partialorder %v820, inf
      %v867 = vsel %vm866, %v820, %v865
      %vm868 = vcmp.eq.f32.partialorder %v820, 0.0
      %v869 = vand.u32 %v820, 2147483648
      %v870 = vsel %vm868, %v869, %v867
      %v871 = vrsqrt.pop %v821
      %v872 = vmul.f32 %v821, %v871
      %vm873 = vcmp.eq.f32.partialorder %v821, inf
      %v874 = vsel %vm873, %v821, %v872
      %vm875 = vcmp.eq.f32.partialorder %v821, 0.0
      %v876 = vand.u32 %v821, 2147483648
      %v877 = vsel %vm875, %v876, %v874
      %v878 = vrsqrt.pop %v822
      %v879 = vmul.f32 %v822, %v878
      %vm880 = vcmp.eq.f32.partialorder %v822, inf
      %v881 = vsel %vm880, %v822, %v879
      %vm882 = vcmp.eq.f32.partialorder %v822, 0.0
      %v883 = vand.u32 %v822, 2147483648
      %v884 = vsel %vm882, %v883, %v881
      %v885 = vrsqrt.pop %v823
      %v886 = vmul.f32 %v823, %v885
      %vm887 = vcmp.eq.f32.partialorder %v823, inf
      %v888 = vsel %vm887, %v823, %v886
      %vm889 = vcmp.eq.f32.partialorder %v823, 0.0
      %v890 = vand.u32 %v823, 2147483648
      %v891 = vsel %vm889, %v890, %v888
      %v892 = vrsqrt.pop %v824
      %v893 = vmul.f32 %v824, %v892
      %vm894 = vcmp.eq.f32.partialorder %v824, inf
      %v895 = vsel %vm894, %v824, %v893
      %vm896 = vcmp.eq.f32.partialorder %v824, 0.0
      %v897 = vand.u32 %v824, 2147483648
      %v898 = vsel %vm896, %v897, %v895
      %v899 = vrsqrt.pop %v825
      %v900 = vmul.f32 %v825, %v899
      %vm901 = vcmp.eq.f32.partialorder %v825, inf
      %v902 = vsel %vm901, %v825, %v900
      %vm903 = vcmp.eq.f32.partialorder %v825, 0.0
      %v904 = vand.u32 %v825, 2147483648
      %v905 = vsel %vm903, %v904, %v902
      %v906 = vrsqrt.pop %v826
      %v907 = vmul.f32 %v826, %v906
      %vm908 = vcmp.eq.f32.partialorder %v826, inf
      %v909 = vsel %vm908, %v826, %v907
      %vm910 = vcmp.eq.f32.partialorder %v826, 0.0
      %v911 = vand.u32 %v826, 2147483648
      %v912 = vsel %vm910, %v911, %v909
      %v913 = vrsqrt.pop %v827
      %v914 = vmul.f32 %v827, %v913
      %vm915 = vcmp.eq.f32.partialorder %v827, inf
      %v916 = vsel %vm915, %v827, %v914
      %vm917 = vcmp.eq.f32.partialorder %v827, 0.0
      %v918 = vand.u32 %v827, 2147483648
      %v919 = vsel %vm917, %v918, %v916
      %v920 = vrsqrt.pop %v828
      %v921 = vmul.f32 %v828, %v920
      %vm922 = vcmp.eq.f32.partialorder %v828, inf
      %v923 = vsel %vm922, %v828, %v921
      %vm924 = vcmp.eq.f32.partialorder %v828, 0.0
      %v925 = vand.u32 %v828, 2147483648
      %v926 = vsel %vm924, %v925, %v923
      %v927 = vrsqrt.pop %v829
      %v928 = vmul.f32 %v829, %v927
      %vm929 = vcmp.eq.f32.partialorder %v829, inf
      %v930 = vsel %vm929, %v829, %v928
      %vm931 = vcmp.eq.f32.partialorder %v829, 0.0
      %v932 = vand.u32 %v829, 2147483648
      %v933 = vsel %vm931, %v932, %v930
      %v934 = vrsqrt.pop %v830
      %v935 = vmul.f32 %v830, %v934
      %vm936 = vcmp.eq.f32.partialorder %v830, inf
      %v937 = vsel %vm936, %v830, %v935
      %vm938 = vcmp.eq.f32.partialorder %v830, 0.0
      %v939 = vand.u32 %v830, 2147483648
      %v940 = vsel %vm938, %v939, %v937
      %v941 = vrsqrt.pop %v831
      %v942 = vmul.f32 %v831, %v941
      %vm943 = vcmp.eq.f32.partialorder %v831, inf
      %v944 = vsel %vm943, %v831, %v942
      %vm945 = vcmp.eq.f32.partialorder %v831, 0.0
      %v946 = vand.u32 %v831, 2147483648
      %v947 = vsel %vm945, %v946, %v944
      %v948 = vrsqrt.pop %v832
      %v949 = vmul.f32 %v832, %v948
      %vm950 = vcmp.eq.f32.partialorder %v832, inf
      %v951 = vsel %vm950, %v832, %v949
      %vm952 = vcmp.eq.f32.partialorder %v832, 0.0
      %v953 = vand.u32 %v832, 2147483648
      %v954 = vsel %vm952, %v953, %v951
      %v955 = vrsqrt.pop %v833
      %v956 = vmul.f32 %v833, %v955
      %vm957 = vcmp.eq.f32.partialorder %v833, inf
      %v958 = vsel %vm957, %v833, %v956
      %vm959 = vcmp.eq.f32.partialorder %v833, 0.0
      %v960 = vand.u32 %v833, 2147483648
      %v961 = vsel %vm959, %v960, %v958
      %v962 = vrsqrt.pop %v834
      %v963 = vmul.f32 %v834, %v962
      %vm964 = vcmp.eq.f32.partialorder %v834, inf
      %v965 = vsel %vm964, %v834, %v963
      %vm966 = vcmp.eq.f32.partialorder %v834, 0.0
      %v967 = vand.u32 %v834, 2147483648
      %v968 = vsel %vm966, %v967, %v965
      %v969 = vrsqrt.pop %v835
      %v970 = vmul.f32 %v835, %v969
      %vm971 = vcmp.eq.f32.partialorder %v835, inf
      %v972 = vsel %vm971, %v835, %v970
      %vm973 = vcmp.eq.f32.partialorder %v835, 0.0
      %v974 = vand.u32 %v835, 2147483648
      %v975 = vsel %vm973, %v974, %v972
      %v976 = vrsqrt.pop %v836
      %v977 = vmul.f32 %v836, %v976
      %vm978 = vcmp.eq.f32.partialorder %v836, inf
      %v979 = vsel %vm978, %v836, %v977
      %vm980 = vcmp.eq.f32.partialorder %v836, 0.0
      %v981 = vand.u32 %v836, 2147483648
      %v982 = vsel %vm980, %v981, %v979
      %v983 = vrsqrt.pop %v837
      %v984 = vmul.f32 %v837, %v983
      %vm985 = vcmp.eq.f32.partialorder %v837, inf
      %v986 = vsel %vm985, %v837, %v984
      %vm987 = vcmp.eq.f32.partialorder %v837, 0.0
      %v988 = vand.u32 %v837, 2147483648
      %v989 = vsel %vm987, %v988, %v986
      %v990 = vrsqrt.pop %v838
      %v991 = vmul.f32 %v838, %v990
      %vm992 = vcmp.eq.f32.partialorder %v838, inf
      %v993 = vsel %vm992, %v838, %v991
      %vm994 = vcmp.eq.f32.partialorder %v838, 0.0
      %v995 = vand.u32 %v838, 2147483648
      %v996 = vsel %vm994, %v995, %v993
      %v997 = vrsqrt.pop %v839
      %v998 = vmul.f32 %v839, %v997
      %vm999 = vcmp.eq.f32.partialorder %v839, inf
      %v1000 = vsel %vm999, %v839, %v998
      %vm1001 = vcmp.eq.f32.partialorder %v839, 0.0
      %v1002 = vand.u32 %v839, 2147483648
      %v1003 = vsel %vm1001, %v1002, %v1000
      %v1004 = vrsqrt.pop %v840
      %v1005 = vmul.f32 %v840, %v1004
      %vm1006 = vcmp.eq.f32.partialorder %v840, inf
      %v1007 = vsel %vm1006, %v840, %v1005
      %vm1008 = vcmp.eq.f32.partialorder %v840, 0.0
      %v1009 = vand.u32 %v840, 2147483648
      %v1010 = vsel %vm1008, %v1009, %v1007
      %v1011 = vrsqrt.pop %v841
      %v1012 = vmul.f32 %v841, %v1011
      %vm1013 = vcmp.eq.f32.partialorder %v841, inf
      %v1014 = vsel %vm1013, %v841, %v1012
      %vm1015 = vcmp.eq.f32.partialorder %v841, 0.0
      %v1016 = vand.u32 %v841, 2147483648
      %v1017 = vsel %vm1015, %v1016, %v1014
      %v1018 = vrsqrt.pop %v842
      %v1019 = vmul.f32 %v842, %v1018
      %vm1020 = vcmp.eq.f32.partialorder %v842, inf
      %v1021 = vsel %vm1020, %v842, %v1019
      %vm1022 = vcmp.eq.f32.partialorder %v842, 0.0
      %v1023 = vand.u32 %v842, 2147483648
      %v1024 = vsel %vm1022, %v1023, %v1021
      %v1025 = vrsqrt.pop %v843
      %v1026 = vmul.f32 %v843, %v1025
      %vm1027 = vcmp.eq.f32.partialorder %v843, inf
      %v1028 = vsel %vm1027, %v843, %v1026
      %vm1029 = vcmp.eq.f32.partialorder %v843, 0.0
      %v1030 = vand.u32 %v843, 2147483648
      %v1031 = vsel %vm1029, %v1030, %v1028
      %v1032 = vrsqrt.pop %v844
      %v1033 = vmul.f32 %v844, %v1032
      %vm1034 = vcmp.eq.f32.partialorder %v844, inf
      %v1035 = vsel %vm1034, %v844, %v1033
      %vm1036 = vcmp.eq.f32.partialorder %v844, 0.0
      %v1037 = vand.u32 %v844, 2147483648
      %v1038 = vsel %vm1036, %v1037, %v1035
      %v1039 = vrsqrt.pop %v845
      %v1040 = vmul.f32 %v845, %v1039
      %vm1041 = vcmp.eq.f32.partialorder %v845, inf
      %v1042 = vsel %vm1041, %v845, %v1040
      %vm1043 = vcmp.eq.f32.partialorder %v845, 0.0
      %v1044 = vand.u32 %v845, 2147483648
      %v1045 = vsel %vm1043, %v1044, %v1042
      %v1046 = vrsqrt.pop %v846
      %v1047 = vmul.f32 %v846, %v1046
      %vm1048 = vcmp.eq.f32.partialorder %v846, inf
      %v1049 = vsel %vm1048, %v846, %v1047
      %vm1050 = vcmp.eq.f32.partialorder %v846, 0.0
      %v1051 = vand.u32 %v846, 2147483648
      %v1052 = vsel %vm1050, %v1051, %v1049
      %v1053 = vrsqrt.pop %v847
      %v1054 = vmul.f32 %v847, %v1053
      %vm1055 = vcmp.eq.f32.partialorder %v847, inf
      %v1056 = vsel %vm1055, %v847, %v1054
      %vm1057 = vcmp.eq.f32.partialorder %v847, 0.0
      %v1058 = vand.u32 %v847, 2147483648
      %v1059 = vsel %vm1057, %v1058, %v1056
      %v1060 = vrsqrt.pop %v848
      %v1061 = vmul.f32 %v848, %v1060
      %vm1062 = vcmp.eq.f32.partialorder %v848, inf
      %v1063 = vsel %vm1062, %v848, %v1061
      %vm1064 = vcmp.eq.f32.partialorder %v848, 0.0
      %v1065 = vand.u32 %v848, 2147483648
      %v1066 = vsel %vm1064, %v1065, %v1063
      %v1067 = vrsqrt.pop %v849
      %v1068 = vmul.f32 %v849, %v1067
      %vm1069 = vcmp.eq.f32.partialorder %v849, inf
      %v1070 = vsel %vm1069, %v849, %v1068
      %vm1071 = vcmp.eq.f32.partialorder %v849, 0.0
      %v1072 = vand.u32 %v849, 2147483648
      %v1073 = vsel %vm1071, %v1072, %v1070
      %v1074 = vmul.f32 %v856, %v754
      %v1075 = vmul.f32 %v863, %v755
      %v1076 = vmul.f32 %v870, %v756
      %v1077 = vmul.f32 %v877, %v757
      %v1078 = vmul.f32 %v884, %v758
      %v1079 = vmul.f32 %v891, %v759
      %v1080 = vmul.f32 %v898, %v760
      %v1081 = vmul.f32 %v905, %v761
      %v1082 = vmul.f32 %v912, %v762
      %v1083 = vmul.f32 %v919, %v763
      %v1084 = vmul.f32 %v926, %v764
      %v1085 = vmul.f32 %v933, %v765
      %v1086 = vmul.f32 %v940, %v766
      %v1087 = vmul.f32 %v947, %v767
      %v1088 = vmul.f32 %v954, %v768
      %v1089 = vmul.f32 %v961, %v769
      %v1090 = vmul.f32 %v968, %v770
      %v1091 = vmul.f32 %v975, %v771
      %v1092 = vmul.f32 %v982, %v772
      %v1093 = vmul.f32 %v989, %v773
      %v1094 = vmul.f32 %v996, %v774
      %v1095 = vmul.f32 %v1003, %v775
      %v1096 = vmul.f32 %v1010, %v776
      %v1097 = vmul.f32 %v1017, %v777
      %v1098 = vmul.f32 %v1024, %v778
      %v1099 = vmul.f32 %v1031, %v779
      %v1100 = vmul.f32 %v1038, %v780
      %v1101 = vmul.f32 %v1045, %v781
      %v1102 = vmul.f32 %v1052, %v782
      %v1103 = vmul.f32 %v1059, %v783
      %v1104 = vmul.f32 %v1066, %v784
      %v1105 = vmul.f32 %v1073, %v785
      %v1106 = vsel %vm369, %v1074, 0.0
      %1107 = vadd.xlane.f32.xlu0 %v1106
      %v1108 = vpop.xlane.xlu0 %1107
      %v1109 = vsel %vm369, %v1075, 0.0
      %1110 = vadd.xlane.f32.xlu0 %v1109
      %v1111 = vpop.xlane.xlu0 %1110
      %v1112 = vsel %vm369, %v1076, 0.0
      %1113 = vadd.xlane.f32.xlu0 %v1112
      %v1114 = vpop.xlane.xlu0 %1113
      %v1115 = vsel %vm369, %v1077, 0.0
      %1116 = vadd.xlane.f32.xlu0 %v1115
      %v1117 = vpop.xlane.xlu0 %1116
      %v1118 = vsel %vm369, %v1078, 0.0
      %1119 = vadd.xlane.f32.xlu0 %v1118
      %v1120 = vpop.xlane.xlu0 %1119
      %v1121 = vsel %vm369, %v1079, 0.0
      %1122 = vadd.xlane.f32.xlu0 %v1121
      %v1123 = vpop.xlane.xlu0 %1122
      %v1124 = vsel %vm369, %v1080, 0.0
      %1125 = vadd.xlane.f32.xlu0 %v1124
      %v1126 = vpop.xlane.xlu0 %1125
      %v1127 = vsel %vm369, %v1081, 0.0
      %1128 = vadd.xlane.f32.xlu0 %v1127
      %v1129 = vpop.xlane.xlu0 %1128
      %v1130 = vsel %vm369, %v1082, 0.0
      %1131 = vadd.xlane.f32.xlu0 %v1130
      %v1132 = vpop.xlane.xlu0 %1131
      %v1133 = vsel %vm369, %v1083, 0.0
      %1134 = vadd.xlane.f32.xlu0 %v1133
      %v1135 = vpop.xlane.xlu0 %1134
      %v1136 = vsel %vm369, %v1084, 0.0
      %1137 = vadd.xlane.f32.xlu0 %v1136
      %v1138 = vpop.xlane.xlu0 %1137
      %v1139 = vsel %vm369, %v1085, 0.0
      %1140 = vadd.xlane.f32.xlu0 %v1139
      %v1141 = vpop.xlane.xlu0 %1140
      %v1142 = vsel %vm369, %v1086, 0.0
      %1143 = vadd.xlane.f32.xlu0 %v1142
      %v1144 = vpop.xlane.xlu0 %1143
      %v1145 = vsel %vm369, %v1087, 0.0
      %1146 = vadd.xlane.f32.xlu0 %v1145
      %v1147 = vpop.xlane.xlu0 %1146
      %v1148 = vsel %vm369, %v1088, 0.0
      %1149 = vadd.xlane.f32.xlu0 %v1148
      %v1150 = vpop.xlane.xlu0 %1149
      %v1151 = vsel %vm369, %v1089, 0.0
      %1152 = vadd.xlane.f32.xlu0 %v1151
      %v1153 = vpop.xlane.xlu0 %1152
      %v1154 = vsel %vm369, %v1090, 0.0
      %1155 = vadd.xlane.f32.xlu0 %v1154
      %v1156 = vpop.xlane.xlu0 %1155
      %v1157 = vsel %vm369, %v1091, 0.0
      %1158 = vadd.xlane.f32.xlu0 %v1157
      %v1159 = vpop.xlane.xlu0 %1158
      %v1160 = vsel %vm369, %v1092, 0.0
      %1161 = vadd.xlane.f32.xlu0 %v1160
      %v1162 = vpop.xlane.xlu0 %1161
      %v1163 = vsel %vm369, %v1093, 0.0
      %1164 = vadd.xlane.f32.xlu0 %v1163
      %v1165 = vpop.xlane.xlu0 %1164
      %v1166 = vsel %vm369, %v1094, 0.0
      %1167 = vadd.xlane.f32.xlu0 %v1166
      %v1168 = vpop.xlane.xlu0 %1167
      %v1169 = vsel %vm369, %v1095, 0.0
      %1170 = vadd.xlane.f32.xlu0 %v1169
      %v1171 = vpop.xlane.xlu0 %1170
      %v1172 = vsel %vm369, %v1096, 0.0
      %1173 = vadd.xlane.f32.xlu0 %v1172
      %v1174 = vpop.xlane.xlu0 %1173
      %v1175 = vsel %vm369, %v1097, 0.0
      %1176 = vadd.xlane.f32.xlu0 %v1175
      %v1177 = vpop.xlane.xlu0 %1176
      %v1178 = vsel %vm369, %v1098, 0.0
      %1179 = vadd.xlane.f32.xlu0 %v1178
      %v1180 = vpop.xlane.xlu0 %1179
      %v1181 = vsel %vm369, %v1099, 0.0
      %1182 = vadd.xlane.f32.xlu0 %v1181
      %v1183 = vpop.xlane.xlu0 %1182
      %v1184 = vsel %vm369, %v1100, 0.0
      %1185 = vadd.xlane.f32.xlu0 %v1184
      %v1186 = vpop.xlane.xlu0 %1185
      %v1187 = vsel %vm369, %v1101, 0.0
      %1188 = vadd.xlane.f32.xlu0 %v1187
      %v1189 = vpop.xlane.xlu0 %1188
      %v1190 = vsel %vm369, %v1102, 0.0
      %1191 = vadd.xlane.f32.xlu0 %v1190
      %v1192 = vpop.xlane.xlu0 %1191
      %v1193 = vsel %vm369, %v1103, 0.0
      %1194 = vadd.xlane.f32.xlu0 %v1193
      %v1195 = vpop.xlane.xlu0 %1194
      %v1196 = vsel %vm369, %v1104, 0.0
      %1197 = vadd.xlane.f32.xlu0 %v1196
      %v1198 = vpop.xlane.xlu0 %1197
      %v1199 = vsel %vm369, %v1105, 0.0
      %1200 = vadd.xlane.f32.xlu0 %v1199
      %v1201 = vpop.xlane.xlu0 %1200
      %v1202 = vlaneseq
      %v1203 = vand.u32 %v1202, 127
      %1204 = vset.pattern.permute.xlu0 0
      %1205 = vperm.xlu0 %1204, %v238
      %v1206 = vpop.permute.xlu0 %1205
      %1207 = vset.pattern.permute.xlu0 0
      %1208 = vperm.xlu0 %1207, %v239
      %v1209 = vpop.permute.xlu0 %1208
      %1210 = vset.pattern.permute.xlu0 0
      %1211 = vperm.xlu0 %1210, %v240
      %v1212 = vpop.permute.xlu0 %1211
      %1213 = vset.pattern.permute.xlu0 0
      %1214 = vperm.xlu0 %1213, %v241
      %v1215 = vpop.permute.xlu0 %1214
      %1216 = vset.pattern.permute.xlu0 0
      %1217 = vperm.xlu0 %1216, %v242
      %v1218 = vpop.permute.xlu0 %1217
      %1219 = vset.pattern.permute.xlu0 0
      %1220 = vperm.xlu0 %1219, %v243
      %v1221 = vpop.permute.xlu0 %1220
      %1222 = vset.pattern.permute.xlu0 0
      %1223 = vperm.xlu0 %1222, %v244
      %v1224 = vpop.permute.xlu0 %1223
      %1225 = vset.pattern.permute.xlu0 0
      %1226 = vperm.xlu0 %1225, %v245
      %v1227 = vpop.permute.xlu0 %1226
      %1228 = vset.pattern.permute.xlu0 0
      %1229 = vperm.xlu0 %1228, %v246
      %v1230 = vpop.permute.xlu0 %1229
      %1231 = vset.pattern.permute.xlu0 0
      %1232 = vperm.xlu0 %1231, %v247
      %v1233 = vpop.permute.xlu0 %1232
      %1234 = vset.pattern.permute.xlu0 0
      %1235 = vperm.xlu0 %1234, %v248
      %v1236 = vpop.permute.xlu0 %1235
      %1237 = vset.pattern.permute.xlu0 0
      %1238 = vperm.xlu0 %1237, %v249
      %v1239 = vpop.permute.xlu0 %1238
      %1240 = vset.pattern.permute.xlu0 0
      %1241 = vperm.xlu0 %1240, %v250
      %v1242 = vpop.permute.xlu0 %1241
      %1243 = vset.pattern.permute.xlu0 0
      %1244 = vperm.xlu0 %1243, %v251
      %v1245 = vpop.permute.xlu0 %1244
      %1246 = vset.pattern.permute.xlu0 0
      %1247 = vperm.xlu0 %1246, %v252
      %v1248 = vpop.permute.xlu0 %1247
      %1249 = vset.pattern.permute.xlu0 0
      %1250 = vperm.xlu0 %1249, %v253
      %v1251 = vpop.permute.xlu0 %1250
      %1252 = vset.pattern.permute.xlu0 0
      %1253 = vperm.xlu0 %1252, %v254
      %v1254 = vpop.permute.xlu0 %1253
      %1255 = vset.pattern.permute.xlu0 0
      %1256 = vperm.xlu0 %1255, %v255
      %v1257 = vpop.permute.xlu0 %1256
      %1258 = vset.pattern.permute.xlu0 0
      %1259 = vperm.xlu0 %1258, %v256
      %v1260 = vpop.permute.xlu0 %1259
      %1261 = vset.pattern.permute.xlu0 0
      %1262 = vperm.xlu0 %1261, %v257
      %v1263 = vpop.permute.xlu0 %1262
      %1264 = vset.pattern.permute.xlu0 0
      %1265 = vperm.xlu0 %1264, %v258
      %v1266 = vpop.permute.xlu0 %1265
      %1267 = vset.pattern.permute.xlu0 0
      %1268 = vperm.xlu0 %1267, %v259
      %v1269 = vpop.permute.xlu0 %1268
      %1270 = vset.pattern.permute.xlu0 0
      %1271 = vperm.xlu0 %1270, %v260
      %v1272 = vpop.permute.xlu0 %1271
      %1273 = vset.pattern.permute.xlu0 0
      %1274 = vperm.xlu0 %1273, %v261
      %v1275 = vpop.permute.xlu0 %1274
      %1276 = vset.pattern.permute.xlu0 0
      %1277 = vperm.xlu0 %1276, %v262
      %v1278 = vpop.permute.xlu0 %1277
      %1279 = vset.pattern.permute.xlu0 0
      %1280 = vperm.xlu0 %1279, %v263
      %v1281 = vpop.permute.xlu0 %1280
      %1282 = vset.pattern.permute.xlu0 0
      %1283 = vperm.xlu0 %1282, %v264
      %v1284 = vpop.permute.xlu0 %1283
      %1285 = vset.pattern.permute.xlu0 0
      %1286 = vperm.xlu0 %1285, %v265
      %v1287 = vpop.permute.xlu0 %1286
      %1288 = vset.pattern.permute.xlu0 0
      %1289 = vperm.xlu0 %1288, %v266
      %v1290 = vpop.permute.xlu0 %1289
      %1291 = vset.pattern.permute.xlu0 0
      %1292 = vperm.xlu0 %1291, %v267
      %v1293 = vpop.permute.xlu0 %1292
      %1294 = vset.pattern.permute.xlu0 0
      %1295 = vperm.xlu0 %1294, %v268
      %v1296 = vpop.permute.xlu0 %1295
      %1297 = vset.pattern.permute.xlu0 0
      %1298 = vperm.xlu0 %1297, %v269
      %v1299 = vpop.permute.xlu0 %1298
      %vm1300 = vcmp.eq.s32.totalorder %v1203, %v1206
      %vm1301 = vcmp.eq.s32.totalorder %v1203, %v1209
      %vm1302 = vcmp.eq.s32.totalorder %v1203, %v1212
      %vm1303 = vcmp.eq.s32.totalorder %v1203, %v1215
      %vm1304 = vcmp.eq.s32.totalorder %v1203, %v1218
      %vm1305 = vcmp.eq.s32.totalorder %v1203, %v1221
      %vm1306 = vcmp.eq.s32.totalorder %v1203, %v1224
      %vm1307 = vcmp.eq.s32.totalorder %v1203, %v1227
      %vm1308 = vcmp.eq.s32.totalorder %v1203, %v1230
      %vm1309 = vcmp.eq.s32.totalorder %v1203, %v1233
      %vm1310 = vcmp.eq.s32.totalorder %v1203, %v1236
      %vm1311 = vcmp.eq.s32.totalorder %v1203, %v1239
      %vm1312 = vcmp.eq.s32.totalorder %v1203, %v1242
      %vm1313 = vcmp.eq.s32.totalorder %v1203, %v1245
      %vm1314 = vcmp.eq.s32.totalorder %v1203, %v1248
      %vm1315 = vcmp.eq.s32.totalorder %v1203, %v1251
      %vm1316 = vcmp.eq.s32.totalorder %v1203, %v1254
      %vm1317 = vcmp.eq.s32.totalorder %v1203, %v1257
      %vm1318 = vcmp.eq.s32.totalorder %v1203, %v1260
      %vm1319 = vcmp.eq.s32.totalorder %v1203, %v1263
      %vm1320 = vcmp.eq.s32.totalorder %v1203, %v1266
      %vm1321 = vcmp.eq.s32.totalorder %v1203, %v1269
      %vm1322 = vcmp.eq.s32.totalorder %v1203, %v1272
      %vm1323 = vcmp.eq.s32.totalorder %v1203, %v1275
      %vm1324 = vcmp.eq.s32.totalorder %v1203, %v1278
      %vm1325 = vcmp.eq.s32.totalorder %v1203, %v1281
      %vm1326 = vcmp.eq.s32.totalorder %v1203, %v1284
      %vm1327 = vcmp.eq.s32.totalorder %v1203, %v1287
      %vm1328 = vcmp.eq.s32.totalorder %v1203, %v1290
      %vm1329 = vcmp.eq.s32.totalorder %v1203, %v1293
      %vm1330 = vcmp.eq.s32.totalorder %v1203, %v1296
      %vm1331 = vcmp.eq.s32.totalorder %v1203, %v1299
      %v1332 = vsel %vm1300, %v754, 0.0
      %v1333 = vsel %vm1301, %v755, 0.0
      %v1334 = vsel %vm1302, %v756, 0.0
      %v1335 = vsel %vm1303, %v757, 0.0
      %v1336 = vsel %vm1304, %v758, 0.0
      %v1337 = vsel %vm1305, %v759, 0.0
      %v1338 = vsel %vm1306, %v760, 0.0
      %v1339 = vsel %vm1307, %v761, 0.0
      %v1340 = vsel %vm1308, %v762, 0.0
      %v1341 = vsel %vm1309, %v763, 0.0
      %v1342 = vsel %vm1310, %v764, 0.0
      %v1343 = vsel %vm1311, %v765, 0.0
      %v1344 = vsel %vm1312, %v766, 0.0
      %v1345 = vsel %vm1313, %v767, 0.0
      %v1346 = vsel %vm1314, %v768, 0.0
      %v1347 = vsel %vm1315, %v769, 0.0
      %v1348 = vsel %vm1316, %v770, 0.0
      %v1349 = vsel %vm1317, %v771, 0.0
      %v1350 = vsel %vm1318, %v772, 0.0
      %v1351 = vsel %vm1319, %v773, 0.0
      %v1352 = vsel %vm1320, %v774, 0.0
      %v1353 = vsel %vm1321, %v775, 0.0
      %v1354 = vsel %vm1322, %v776, 0.0
      %v1355 = vsel %vm1323, %v777, 0.0
      %v1356 = vsel %vm1324, %v778, 0.0
      %v1357 = vsel %vm1325, %v779, 0.0
      %v1358 = vsel %vm1326, %v780, 0.0
      %v1359 = vsel %vm1327, %v781, 0.0
      %v1360 = vsel %vm1328, %v782, 0.0
      %v1361 = vsel %vm1329, %v783, 0.0
      %v1362 = vsel %vm1330, %v784, 0.0
      %v1363 = vsel %vm1331, %v785, 0.0
      %v1364 = vsel %vm369, %v1332, 0.0
      %1365 = vadd.xlane.f32.xlu0 %v1364
      %v1366 = vpop.xlane.xlu0 %1365
      %v1367 = vsel %vm369, %v1333, 0.0
      %1368 = vadd.xlane.f32.xlu0 %v1367
      %v1369 = vpop.xlane.xlu0 %1368
      %v1370 = vsel %vm369, %v1334, 0.0
      %1371 = vadd.xlane.f32.xlu0 %v1370
      %v1372 = vpop.xlane.xlu0 %1371
      %v1373 = vsel %vm369, %v1335, 0.0
      %1374 = vadd.xlane.f32.xlu0 %v1373
      %v1375 = vpop.xlane.xlu0 %1374
      %v1376 = vsel %vm369, %v1336, 0.0
      %1377 = vadd.xlane.f32.xlu0 %v1376
      %v1378 = vpop.xlane.xlu0 %1377
      %v1379 = vsel %vm369, %v1337, 0.0
      %1380 = vadd.xlane.f32.xlu0 %v1379
      %v1381 = vpop.xlane.xlu0 %1380
      %v1382 = vsel %vm369, %v1338, 0.0
      %1383 = vadd.xlane.f32.xlu0 %v1382
      %v1384 = vpop.xlane.xlu0 %1383
      %v1385 = vsel %vm369, %v1339, 0.0
      %1386 = vadd.xlane.f32.xlu0 %v1385
      %v1387 = vpop.xlane.xlu0 %1386
      %v1388 = vsel %vm369, %v1340, 0.0
      %1389 = vadd.xlane.f32.xlu0 %v1388
      %v1390 = vpop.xlane.xlu0 %1389
      %v1391 = vsel %vm369, %v1341, 0.0
      %1392 = vadd.xlane.f32.xlu0 %v1391
      %v1393 = vpop.xlane.xlu0 %1392
      %v1394 = vsel %vm369, %v1342, 0.0
      %1395 = vadd.xlane.f32.xlu0 %v1394
      %v1396 = vpop.xlane.xlu0 %1395
      %v1397 = vsel %vm369, %v1343, 0.0
      %1398 = vadd.xlane.f32.xlu0 %v1397
      %v1399 = vpop.xlane.xlu0 %1398
      %v1400 = vsel %vm369, %v1344, 0.0
      %1401 = vadd.xlane.f32.xlu0 %v1400
      %v1402 = vpop.xlane.xlu0 %1401
      %v1403 = vsel %vm369, %v1345, 0.0
      %1404 = vadd.xlane.f32.xlu0 %v1403
      %v1405 = vpop.xlane.xlu0 %1404
      %v1406 = vsel %vm369, %v1346, 0.0
      %1407 = vadd.xlane.f32.xlu0 %v1406
      %v1408 = vpop.xlane.xlu0 %1407
      %v1409 = vsel %vm369, %v1347, 0.0
      %1410 = vadd.xlane.f32.xlu0 %v1409
      %v1411 = vpop.xlane.xlu0 %1410
      %v1412 = vsel %vm369, %v1348, 0.0
      %1413 = vadd.xlane.f32.xlu0 %v1412
      %v1414 = vpop.xlane.xlu0 %1413
      %v1415 = vsel %vm369, %v1349, 0.0
      %1416 = vadd.xlane.f32.xlu0 %v1415
      %v1417 = vpop.xlane.xlu0 %1416
      %v1418 = vsel %vm369, %v1350, 0.0
      %1419 = vadd.xlane.f32.xlu0 %v1418
      %v1420 = vpop.xlane.xlu0 %1419
      %v1421 = vsel %vm369, %v1351, 0.0
      %1422 = vadd.xlane.f32.xlu0 %v1421
      %v1423 = vpop.xlane.xlu0 %1422
      %v1424 = vsel %vm369, %v1352, 0.0
      %1425 = vadd.xlane.f32.xlu0 %v1424
      %v1426 = vpop.xlane.xlu0 %1425
      %v1427 = vsel %vm369, %v1353, 0.0
      %1428 = vadd.xlane.f32.xlu0 %v1427
      %v1429 = vpop.xlane.xlu0 %1428
      %v1430 = vsel %vm369, %v1354, 0.0
      %1431 = vadd.xlane.f32.xlu0 %v1430
      %v1432 = vpop.xlane.xlu0 %1431
      %v1433 = vsel %vm369, %v1355, 0.0
      %1434 = vadd.xlane.f32.xlu0 %v1433
      %v1435 = vpop.xlane.xlu0 %1434
      %v1436 = vsel %vm369, %v1356, 0.0
      %1437 = vadd.xlane.f32.xlu0 %v1436
      %v1438 = vpop.xlane.xlu0 %1437
      %v1439 = vsel %vm369, %v1357, 0.0
      %1440 = vadd.xlane.f32.xlu0 %v1439
      %v1441 = vpop.xlane.xlu0 %1440
      %v1442 = vsel %vm369, %v1358, 0.0
      %1443 = vadd.xlane.f32.xlu0 %v1442
      %v1444 = vpop.xlane.xlu0 %1443
      %v1445 = vsel %vm369, %v1359, 0.0
      %1446 = vadd.xlane.f32.xlu0 %v1445
      %v1447 = vpop.xlane.xlu0 %1446
      %v1448 = vsel %vm369, %v1360, 0.0
      %1449 = vadd.xlane.f32.xlu0 %v1448
      %v1450 = vpop.xlane.xlu0 %1449
      %v1451 = vsel %vm369, %v1361, 0.0
      %1452 = vadd.xlane.f32.xlu0 %v1451
      %v1453 = vpop.xlane.xlu0 %1452
      %v1454 = vsel %vm369, %v1362, 0.0
      %1455 = vadd.xlane.f32.xlu0 %v1454
      %v1456 = vpop.xlane.xlu0 %1455
      %v1457 = vsel %vm369, %v1363, 0.0
      %1458 = vadd.xlane.f32.xlu0 %v1457
      %v1459 = vpop.xlane.xlu0 %1458
      %v1460 = vmul.f32 %v1366, 1.442695
      %v1461 = vpow.pop %v1460
      %v1462 = vmul.f32 %v1369, 1.442695
      %v1463 = vpow.pop %v1462
      %v1464 = vmul.f32 %v1372, 1.442695
      %v1465 = vpow.pop %v1464
      %v1466 = vmul.f32 %v1375, 1.442695
      %v1467 = vpow.pop %v1466
      %v1468 = vmul.f32 %v1378, 1.442695
      %v1469 = vpow.pop %v1468
      %v1470 = vmul.f32 %v1381, 1.442695
      %v1471 = vpow.pop %v1470
      %v1472 = vmul.f32 %v1384, 1.442695
      %v1473 = vpow.pop %v1472
      %v1474 = vmul.f32 %v1387, 1.442695
      %v1475 = vpow.pop %v1474
      %v1476 = vmul.f32 %v1390, 1.442695
      %v1477 = vpow.pop %v1476
      %v1478 = vmul.f32 %v1393, 1.442695
      %v1479 = vpow.pop %v1478
      %v1480 = vmul.f32 %v1396, 1.442695
      %v1481 = vpow.pop %v1480
      %v1482 = vmul.f32 %v1399, 1.442695
      %v1483 = vpow.pop %v1482
      %v1484 = vmul.f32 %v1402, 1.442695
      %v1485 = vpow.pop %v1484
      %v1486 = vmul.f32 %v1405, 1.442695
      %v1487 = vpow.pop %v1486
      %v1488 = vmul.f32 %v1408, 1.442695
      %v1489 = vpow.pop %v1488
      %v1490 = vmul.f32 %v1411, 1.442695
      %v1491 = vpow.pop %v1490
      %v1492 = vmul.f32 %v1414, 1.442695
      %v1493 = vpow.pop %v1492
      %v1494 = vmul.f32 %v1417, 1.442695
      %v1495 = vpow.pop %v1494
      %v1496 = vmul.f32 %v1420, 1.442695
      %v1497 = vpow.pop %v1496
      %v1498 = vmul.f32 %v1423, 1.442695
      %v1499 = vpow.pop %v1498
      %v1500 = vmul.f32 %v1426, 1.442695
      %v1501 = vpow.pop %v1500
      %v1502 = vmul.f32 %v1429, 1.442695
      %v1503 = vpow.pop %v1502
      %v1504 = vmul.f32 %v1432, 1.442695
      %v1505 = vpow.pop %v1504
      %v1506 = vmul.f32 %v1435, 1.442695
      %v1507 = vpow.pop %v1506
      %v1508 = vmul.f32 %v1438, 1.442695
      %v1509 = vpow.pop %v1508
      %v1510 = vmul.f32 %v1441, 1.442695
      %v1511 = vpow.pop %v1510
      %v1512 = vmul.f32 %v1444, 1.442695
      %v1513 = vpow.pop %v1512
      %v1514 = vmul.f32 %v1447, 1.442695
      %v1515 = vpow.pop %v1514
      %v1516 = vmul.f32 %v1450, 1.442695
      %v1517 = vpow.pop %v1516
      %v1518 = vmul.f32 %v1453, 1.442695
      %v1519 = vpow.pop %v1518
      %v1520 = vmul.f32 %v1456, 1.442695
      %v1521 = vpow.pop %v1520
      %v1522 = vmul.f32 %v1459, 1.442695
      %v1523 = vpow.pop %v1522
      %v1524 = vsub.s32 %v238, 1
      %v1525 = vsub.s32 %v239, 1
      %v1526 = vsub.s32 %v240, 1
      %v1527 = vsub.s32 %v241, 1
      %v1528 = vsub.s32 %v242, 1
      %v1529 = vsub.s32 %v243, 1
      %v1530 = vsub.s32 %v244, 1
      %v1531 = vsub.s32 %v245, 1
      %v1532 = vsub.s32 %v246, 1
      %v1533 = vsub.s32 %v247, 1
      %v1534 = vsub.s32 %v248, 1
      %v1535 = vsub.s32 %v249, 1
      %v1536 = vsub.s32 %v250, 1
      %v1537 = vsub.s32 %v251, 1
      %v1538 = vsub.s32 %v252, 1
      %v1539 = vsub.s32 %v253, 1
      %v1540 = vsub.s32 %v254, 1
      %v1541 = vsub.s32 %v255, 1
      %v1542 = vsub.s32 %v256, 1
      %v1543 = vsub.s32 %v257, 1
      %v1544 = vsub.s32 %v258, 1
      %v1545 = vsub.s32 %v259, 1
      %v1546 = vsub.s32 %v260, 1
      %v1547 = vsub.s32 %v261, 1
      %v1548 = vsub.s32 %v262, 1
      %v1549 = vsub.s32 %v263, 1
      %v1550 = vsub.s32 %v264, 1
      %v1551 = vsub.s32 %v265, 1
      %v1552 = vsub.s32 %v266, 1
      %v1553 = vsub.s32 %v267, 1
      %v1554 = vsub.s32 %v268, 1
      %v1555 = vsub.s32 %v269, 1
      %1556 = vset.pattern.permute.xlu0 0
      %1557 = vperm.xlu0 %1556, %v1524
      %v1558 = vpop.permute.xlu0 %1557
      %1559 = vset.pattern.permute.xlu0 0
      %1560 = vperm.xlu0 %1559, %v1525
      %v1561 = vpop.permute.xlu0 %1560
      %1562 = vset.pattern.permute.xlu0 0
      %1563 = vperm.xlu0 %1562, %v1526
      %v1564 = vpop.permute.xlu0 %1563
      %1565 = vset.pattern.permute.xlu0 0
      %1566 = vperm.xlu0 %1565, %v1527
      %v1567 = vpop.permute.xlu0 %1566
      %1568 = vset.pattern.permute.xlu0 0
      %1569 = vperm.xlu0 %1568, %v1528
      %v1570 = vpop.permute.xlu0 %1569
      %1571 = vset.pattern.permute.xlu0 0
      %1572 = vperm.xlu0 %1571, %v1529
      %v1573 = vpop.permute.xlu0 %1572
      %1574 = vset.pattern.permute.xlu0 0
      %1575 = vperm.xlu0 %1574, %v1530
      %v1576 = vpop.permute.xlu0 %1575
      %1577 = vset.pattern.permute.xlu0 0
      %1578 = vperm.xlu0 %1577, %v1531
      %v1579 = vpop.permute.xlu0 %1578
      %1580 = vset.pattern.permute.xlu0 0
      %1581 = vperm.xlu0 %1580, %v1532
      %v1582 = vpop.permute.xlu0 %1581
      %1583 = vset.pattern.permute.xlu0 0
      %1584 = vperm.xlu0 %1583, %v1533
      %v1585 = vpop.permute.xlu0 %1584
      %1586 = vset.pattern.permute.xlu0 0
      %1587 = vperm.xlu0 %1586, %v1534
      %v1588 = vpop.permute.xlu0 %1587
      %1589 = vset.pattern.permute.xlu0 0
      %1590 = vperm.xlu0 %1589, %v1535
      %v1591 = vpop.permute.xlu0 %1590
      %1592 = vset.pattern.permute.xlu0 0
      %1593 = vperm.xlu0 %1592, %v1536
      %v1594 = vpop.permute.xlu0 %1593
      %1595 = vset.pattern.permute.xlu0 0
      %1596 = vperm.xlu0 %1595, %v1537
      %v1597 = vpop.permute.xlu0 %1596
      %1598 = vset.pattern.permute.xlu0 0
      %1599 = vperm.xlu0 %1598, %v1538
      %v1600 = vpop.permute.xlu0 %1599
      %1601 = vset.pattern.permute.xlu0 0
      %1602 = vperm.xlu0 %1601, %v1539
      %v1603 = vpop.permute.xlu0 %1602
      %1604 = vset.pattern.permute.xlu0 0
      %1605 = vperm.xlu0 %1604, %v1540
      %v1606 = vpop.permute.xlu0 %1605
      %1607 = vset.pattern.permute.xlu0 0
      %1608 = vperm.xlu0 %1607, %v1541
      %v1609 = vpop.permute.xlu0 %1608
      %1610 = vset.pattern.permute.xlu0 0
      %1611 = vperm.xlu0 %1610, %v1542
      %v1612 = vpop.permute.xlu0 %1611
      %1613 = vset.pattern.permute.xlu0 0
      %1614 = vperm.xlu0 %1613, %v1543
      %v1615 = vpop.permute.xlu0 %1614
      %1616 = vset.pattern.permute.xlu0 0
      %1617 = vperm.xlu0 %1616, %v1544
      %v1618 = vpop.permute.xlu0 %1617
      %1619 = vset.pattern.permute.xlu0 0
      %1620 = vperm.xlu0 %1619, %v1545
      %v1621 = vpop.permute.xlu0 %1620
      %1622 = vset.pattern.permute.xlu0 0
      %1623 = vperm.xlu0 %1622, %v1546
      %v1624 = vpop.permute.xlu0 %1623
      %1625 = vset.pattern.permute.xlu0 0
      %1626 = vperm.xlu0 %1625, %v1547
      %v1627 = vpop.permute.xlu0 %1626
      %1628 = vset.pattern.permute.xlu0 0
      %1629 = vperm.xlu0 %1628, %v1548
      %v1630 = vpop.permute.xlu0 %1629
      %1631 = vset.pattern.permute.xlu0 0
      %1632 = vperm.xlu0 %1631, %v1549
      %v1633 = vpop.permute.xlu0 %1632
      %1634 = vset.pattern.permute.xlu0 0
      %1635 = vperm.xlu0 %1634, %v1550
      %v1636 = vpop.permute.xlu0 %1635
      %1637 = vset.pattern.permute.xlu0 0
      %1638 = vperm.xlu0 %1637, %v1551
      %v1639 = vpop.permute.xlu0 %1638
      %1640 = vset.pattern.permute.xlu0 0
      %1641 = vperm.xlu0 %1640, %v1552
      %v1642 = vpop.permute.xlu0 %1641
      %1643 = vset.pattern.permute.xlu0 0
      %1644 = vperm.xlu0 %1643, %v1553
      %v1645 = vpop.permute.xlu0 %1644
      %1646 = vset.pattern.permute.xlu0 0
      %1647 = vperm.xlu0 %1646, %v1554
      %v1648 = vpop.permute.xlu0 %1647
      %1649 = vset.pattern.permute.xlu0 0
      %1650 = vperm.xlu0 %1649, %v1555
      %v1651 = vpop.permute.xlu0 %1650
      %vm1652 = vcmp.eq.s32.totalorder %v1203, %v1558
      %vm1653 = vcmp.eq.s32.totalorder %v1203, %v1561
      %vm1654 = vcmp.eq.s32.totalorder %v1203, %v1564
      %vm1655 = vcmp.eq.s32.totalorder %v1203, %v1567
      %vm1656 = vcmp.eq.s32.totalorder %v1203, %v1570
      %vm1657 = vcmp.eq.s32.totalorder %v1203, %v1573
      %vm1658 = vcmp.eq.s32.totalorder %v1203, %v1576
      %vm1659 = vcmp.eq.s32.totalorder %v1203, %v1579
      %vm1660 = vcmp.eq.s32.totalorder %v1203, %v1582
      %vm1661 = vcmp.eq.s32.totalorder %v1203, %v1585
      %vm1662 = vcmp.eq.s32.totalorder %v1203, %v1588
      %vm1663 = vcmp.eq.s32.totalorder %v1203, %v1591
      %vm1664 = vcmp.eq.s32.totalorder %v1203, %v1594
      %vm1665 = vcmp.eq.s32.totalorder %v1203, %v1597
      %vm1666 = vcmp.eq.s32.totalorder %v1203, %v1600
      %vm1667 = vcmp.eq.s32.totalorder %v1203, %v1603
      %vm1668 = vcmp.eq.s32.totalorder %v1203, %v1606
      %vm1669 = vcmp.eq.s32.totalorder %v1203, %v1609
      %vm1670 = vcmp.eq.s32.totalorder %v1203, %v1612
      %vm1671 = vcmp.eq.s32.totalorder %v1203, %v1615
      %vm1672 = vcmp.eq.s32.totalorder %v1203, %v1618
      %vm1673 = vcmp.eq.s32.totalorder %v1203, %v1621
      %vm1674 = vcmp.eq.s32.totalorder %v1203, %v1624
      %vm1675 = vcmp.eq.s32.totalorder %v1203, %v1627
      %vm1676 = vcmp.eq.s32.totalorder %v1203, %v1630
      %vm1677 = vcmp.eq.s32.totalorder %v1203, %v1633
      %vm1678 = vcmp.eq.s32.totalorder %v1203, %v1636
      %vm1679 = vcmp.eq.s32.totalorder %v1203, %v1639
      %vm1680 = vcmp.eq.s32.totalorder %v1203, %v1642
      %vm1681 = vcmp.eq.s32.totalorder %v1203, %v1645
      %vm1682 = vcmp.eq.s32.totalorder %v1203, %v1648
      %vm1683 = vcmp.eq.s32.totalorder %v1203, %v1651
      %vm1684 = vcmp.ge.s32.totalorder %v238, 1
      %vm1685 = vcmp.ge.s32.totalorder %v239, 1
      %vm1686 = vcmp.ge.s32.totalorder %v240, 1
      %vm1687 = vcmp.ge.s32.totalorder %v241, 1
      %vm1688 = vcmp.ge.s32.totalorder %v242, 1
      %vm1689 = vcmp.ge.s32.totalorder %v243, 1
      %vm1690 = vcmp.ge.s32.totalorder %v244, 1
      %vm1691 = vcmp.ge.s32.totalorder %v245, 1
      %vm1692 = vcmp.ge.s32.totalorder %v246, 1
      %vm1693 = vcmp.ge.s32.totalorder %v247, 1
      %vm1694 = vcmp.ge.s32.totalorder %v248, 1
      %vm1695 = vcmp.ge.s32.totalorder %v249, 1
      %vm1696 = vcmp.ge.s32.totalorder %v250, 1
      %vm1697 = vcmp.ge.s32.totalorder %v251, 1
      %vm1698 = vcmp.ge.s32.totalorder %v252, 1
      %vm1699 = vcmp.ge.s32.totalorder %v253, 1
      %vm1700 = vcmp.ge.s32.totalorder %v254, 1
      %vm1701 = vcmp.ge.s32.totalorder %v255, 1
      %vm1702 = vcmp.ge.s32.totalorder %v256, 1
      %vm1703 = vcmp.ge.s32.totalorder %v257, 1
      %vm1704 = vcmp.ge.s32.totalorder %v258, 1
      %vm1705 = vcmp.ge.s32.totalorder %v259, 1
      %vm1706 = vcmp.ge.s32.totalorder %v260, 1
      %vm1707 = vcmp.ge.s32.totalorder %v261, 1
      %vm1708 = vcmp.ge.s32.totalorder %v262, 1
      %vm1709 = vcmp.ge.s32.totalorder %v263, 1
      %vm1710 = vcmp.ge.s32.totalorder %v264, 1
      %vm1711 = vcmp.ge.s32.totalorder %v265, 1
      %vm1712 = vcmp.ge.s32.totalorder %v266, 1
      %vm1713 = vcmp.ge.s32.totalorder %v267, 1
      %vm1714 = vcmp.ge.s32.totalorder %v268, 1
      %vm1715 = vcmp.ge.s32.totalorder %v269, 1
      %v1716 = vsel %vm1684, 1, 0
      %v1717 = vsel %vm1685, 1, 0
      %v1718 = vsel %vm1686, 1, 0
      %v1719 = vsel %vm1687, 1, 0
      %v1720 = vsel %vm1688, 1, 0
      %v1721 = vsel %vm1689, 1, 0
      %v1722 = vsel %vm1690, 1, 0
      %v1723 = vsel %vm1691, 1, 0
      %v1724 = vsel %vm1692, 1, 0
      %v1725 = vsel %vm1693, 1, 0
      %v1726 = vsel %vm1694, 1, 0
      %v1727 = vsel %vm1695, 1, 0
      %v1728 = vsel %vm1696, 1, 0
      %v1729 = vsel %vm1697, 1, 0
      %v1730 = vsel %vm1698, 1, 0
      %v1731 = vsel %vm1699, 1, 0
      %v1732 = vsel %vm1700, 1, 0
      %v1733 = vsel %vm1701, 1, 0
      %v1734 = vsel %vm1702, 1, 0
      %v1735 = vsel %vm1703, 1, 0
      %v1736 = vsel %vm1704, 1, 0
      %v1737 = vsel %vm1705, 1, 0
      %v1738 = vsel %vm1706, 1, 0
      %v1739 = vsel %vm1707, 1, 0
      %v1740 = vsel %vm1708, 1, 0
      %v1741 = vsel %vm1709, 1, 0
      %v1742 = vsel %vm1710, 1, 0
      %v1743 = vsel %vm1711, 1, 0
      %v1744 = vsel %vm1712, 1, 0
      %v1745 = vsel %vm1713, 1, 0
      %v1746 = vsel %vm1714, 1, 0
      %v1747 = vsel %vm1715, 1, 0
      %1748 = vset.pattern.permute.xlu0 0
      %1749 = vperm.xlu0 %1748, %v1716
      %v1750 = vpop.permute.xlu0 %1749
      %1751 = vset.pattern.permute.xlu0 0
      %1752 = vperm.xlu0 %1751, %v1717
      %v1753 = vpop.permute.xlu0 %1752
      %1754 = vset.pattern.permute.xlu0 0
      %1755 = vperm.xlu0 %1754, %v1718
      %v1756 = vpop.permute.xlu0 %1755
      %1757 = vset.pattern.permute.xlu0 0
      %1758 = vperm.xlu0 %1757, %v1719
      %v1759 = vpop.permute.xlu0 %1758
      %1760 = vset.pattern.permute.xlu0 0
      %1761 = vperm.xlu0 %1760, %v1720
      %v1762 = vpop.permute.xlu0 %1761
      %1763 = vset.pattern.permute.xlu0 0
      %1764 = vperm.xlu0 %1763, %v1721
      %v1765 = vpop.permute.xlu0 %1764
      %1766 = vset.pattern.permute.xlu0 0
      %1767 = vperm.xlu0 %1766, %v1722
      %v1768 = vpop.permute.xlu0 %1767
      %1769 = vset.pattern.permute.xlu0 0
      %1770 = vperm.xlu0 %1769, %v1723
      %v1771 = vpop.permute.xlu0 %1770
      %1772 = vset.pattern.permute.xlu0 0
      %1773 = vperm.xlu0 %1772, %v1724
      %v1774 = vpop.permute.xlu0 %1773
      %1775 = vset.pattern.permute.xlu0 0
      %1776 = vperm.xlu0 %1775, %v1725
      %v1777 = vpop.permute.xlu0 %1776
      %1778 = vset.pattern.permute.xlu0 0
      %1779 = vperm.xlu0 %1778, %v1726
      %v1780 = vpop.permute.xlu0 %1779
      %1781 = vset.pattern.permute.xlu0 0
      %1782 = vperm.xlu0 %1781, %v1727
      %v1783 = vpop.permute.xlu0 %1782
      %1784 = vset.pattern.permute.xlu0 0
      %1785 = vperm.xlu0 %1784, %v1728
      %v1786 = vpop.permute.xlu0 %1785
      %1787 = vset.pattern.permute.xlu0 0
      %1788 = vperm.xlu0 %1787, %v1729
      %v1789 = vpop.permute.xlu0 %1788
      %1790 = vset.pattern.permute.xlu0 0
      %1791 = vperm.xlu0 %1790, %v1730
      %v1792 = vpop.permute.xlu0 %1791
      %1793 = vset.pattern.permute.xlu0 0
      %1794 = vperm.xlu0 %1793, %v1731
      %v1795 = vpop.permute.xlu0 %1794
      %1796 = vset.pattern.permute.xlu0 0
      %1797 = vperm.xlu0 %1796, %v1732
      %v1798 = vpop.permute.xlu0 %1797
      %1799 = vset.pattern.permute.xlu0 0
      %1800 = vperm.xlu0 %1799, %v1733
      %v1801 = vpop.permute.xlu0 %1800
      %1802 = vset.pattern.permute.xlu0 0
      %1803 = vperm.xlu0 %1802, %v1734
      %v1804 = vpop.permute.xlu0 %1803
      %1805 = vset.pattern.permute.xlu0 0
      %1806 = vperm.xlu0 %1805, %v1735
      %v1807 = vpop.permute.xlu0 %1806
      %1808 = vset.pattern.permute.xlu0 0
      %1809 = vperm.xlu0 %1808, %v1736
      %v1810 = vpop.permute.xlu0 %1809
      %1811 = vset.pattern.permute.xlu0 0
      %1812 = vperm.xlu0 %1811, %v1737
      %v1813 = vpop.permute.xlu0 %1812
      %1814 = vset.pattern.permute.xlu0 0
      %1815 = vperm.xlu0 %1814, %v1738
      %v1816 = vpop.permute.xlu0 %1815
      %1817 = vset.pattern.permute.xlu0 0
      %1818 = vperm.xlu0 %1817, %v1739
      %v1819 = vpop.permute.xlu0 %1818
      %1820 = vset.pattern.permute.xlu0 0
      %1821 = vperm.xlu0 %1820, %v1740
      %v1822 = vpop.permute.xlu0 %1821
      %1823 = vset.pattern.permute.xlu0 0
      %1824 = vperm.xlu0 %1823, %v1741
      %v1825 = vpop.permute.xlu0 %1824
      %1826 = vset.pattern.permute.xlu0 0
      %1827 = vperm.xlu0 %1826, %v1742
      %v1828 = vpop.permute.xlu0 %1827
      %1829 = vset.pattern.permute.xlu0 0
      %1830 = vperm.xlu0 %1829, %v1743
      %v1831 = vpop.permute.xlu0 %1830
      %1832 = vset.pattern.permute.xlu0 0
      %1833 = vperm.xlu0 %1832, %v1744
      %v1834 = vpop.permute.xlu0 %1833
      %1835 = vset.pattern.permute.xlu0 0
      %1836 = vperm.xlu0 %1835, %v1745
      %v1837 = vpop.permute.xlu0 %1836
      %1838 = vset.pattern.permute.xlu0 0
      %1839 = vperm.xlu0 %1838, %v1746
      %v1840 = vpop.permute.xlu0 %1839
      %1841 = vset.pattern.permute.xlu0 0
      %1842 = vperm.xlu0 %1841, %v1747
      %v1843 = vpop.permute.xlu0 %1842
      %vm1844 = vcmp.eq.s32.totalorder %v1750, 1
      %vm1845 = vcmp.eq.s32.totalorder %v1753, 1
      %vm1846 = vcmp.eq.s32.totalorder %v1756, 1
      %vm1847 = vcmp.eq.s32.totalorder %v1759, 1
      %vm1848 = vcmp.eq.s32.totalorder %v1762, 1
      %vm1849 = vcmp.eq.s32.totalorder %v1765, 1
      %vm1850 = vcmp.eq.s32.totalorder %v1768, 1
      %vm1851 = vcmp.eq.s32.totalorder %v1771, 1
      %vm1852 = vcmp.eq.s32.totalorder %v1774, 1
      %vm1853 = vcmp.eq.s32.totalorder %v1777, 1
      %vm1854 = vcmp.eq.s32.totalorder %v1780, 1
      %vm1855 = vcmp.eq.s32.totalorder %v1783, 1
      %vm1856 = vcmp.eq.s32.totalorder %v1786, 1
      %vm1857 = vcmp.eq.s32.totalorder %v1789, 1
      %vm1858 = vcmp.eq.s32.totalorder %v1792, 1
      %vm1859 = vcmp.eq.s32.totalorder %v1795, 1
      %vm1860 = vcmp.eq.s32.totalorder %v1798, 1
      %vm1861 = vcmp.eq.s32.totalorder %v1801, 1
      %vm1862 = vcmp.eq.s32.totalorder %v1804, 1
      %vm1863 = vcmp.eq.s32.totalorder %v1807, 1
      %vm1864 = vcmp.eq.s32.totalorder %v1810, 1
      %vm1865 = vcmp.eq.s32.totalorder %v1813, 1
      %vm1866 = vcmp.eq.s32.totalorder %v1816, 1
      %vm1867 = vcmp.eq.s32.totalorder %v1819, 1
      %vm1868 = vcmp.eq.s32.totalorder %v1822, 1
      %vm1869 = vcmp.eq.s32.totalorder %v1825, 1
      %vm1870 = vcmp.eq.s32.totalorder %v1828, 1
      %vm1871 = vcmp.eq.s32.totalorder %v1831, 1
      %vm1872 = vcmp.eq.s32.totalorder %v1834, 1
      %vm1873 = vcmp.eq.s32.totalorder %v1837, 1
      %vm1874 = vcmp.eq.s32.totalorder %v1840, 1
      %vm1875 = vcmp.eq.s32.totalorder %v1843, 1
      %vm1876 = vmand %vm1652, %vm1844
      %vm1877 = vmand %vm1653, %vm1845
      %vm1878 = vmand %vm1654, %vm1846
      %vm1879 = vmand %vm1655, %vm1847
      %vm1880 = vmand %vm1656, %vm1848
      %vm1881 = vmand %vm1657, %vm1849
      %vm1882 = vmand %vm1658, %vm1850
      %vm1883 = vmand %vm1659, %vm1851
      %vm1884 = vmand %vm1660, %vm1852
      %vm1885 = vmand %vm1661, %vm1853
      %vm1886 = vmand %vm1662, %vm1854
      %vm1887 = vmand %vm1663, %vm1855
      %vm1888 = vmand %vm1664, %vm1856
      %vm1889 = vmand %vm1665, %vm1857
      %vm1890 = vmand %vm1666, %vm1858
      %vm1891 = vmand %vm1667, %vm1859
      %vm1892 = vmand %vm1668, %vm1860
      %vm1893 = vmand %vm1669, %vm1861
      %vm1894 = vmand %vm1670, %vm1862
      %vm1895 = vmand %vm1671, %vm1863
      %vm1896 = vmand %vm1672, %vm1864
      %vm1897 = vmand %vm1673, %vm1865
      %vm1898 = vmand %vm1674, %vm1866
      %vm1899 = vmand %vm1675, %vm1867
      %vm1900 = vmand %vm1676, %vm1868
      %vm1901 = vmand %vm1677, %vm1869
      %vm1902 = vmand %vm1678, %vm1870
      %vm1903 = vmand %vm1679, %vm1871
      %vm1904 = vmand %vm1680, %vm1872
      %vm1905 = vmand %vm1681, %vm1873
      %vm1906 = vmand %vm1682, %vm1874
      %vm1907 = vmand %vm1683, %vm1875
      %v1908 = vsel %vm1876, %v499, 0.0
      %v1909 = vsel %vm1877, %v501, 0.0
      %v1910 = vsel %vm1878, %v503, 0.0
      %v1911 = vsel %vm1879, %v505, 0.0
      %v1912 = vsel %vm1880, %v507, 0.0
      %v1913 = vsel %vm1881, %v509, 0.0
      %v1914 = vsel %vm1882, %v511, 0.0
      %v1915 = vsel %vm1883, %v513, 0.0
      %v1916 = vsel %vm1884, %v515, 0.0
      %v1917 = vsel %vm1885, %v517, 0.0
      %v1918 = vsel %vm1886, %v519, 0.0
      %v1919 = vsel %vm1887, %v521, 0.0
      %v1920 = vsel %vm1888, %v523, 0.0
      %v1921 = vsel %vm1889, %v525, 0.0
      %v1922 = vsel %vm1890, %v527, 0.0
      %v1923 = vsel %vm1891, %v529, 0.0
      %v1924 = vsel %vm1892, %v531, 0.0
      %v1925 = vsel %vm1893, %v533, 0.0
      %v1926 = vsel %vm1894, %v535, 0.0
      %v1927 = vsel %vm1895, %v537, 0.0
      %v1928 = vsel %vm1896, %v539, 0.0
      %v1929 = vsel %vm1897, %v541, 0.0
      %v1930 = vsel %vm1898, %v543, 0.0
      %v1931 = vsel %vm1899, %v545, 0.0
      %v1932 = vsel %vm1900, %v547, 0.0
      %v1933 = vsel %vm1901, %v549, 0.0
      %v1934 = vsel %vm1902, %v551, 0.0
      %v1935 = vsel %vm1903, %v553, 0.0
      %v1936 = vsel %vm1904, %v555, 0.0
      %v1937 = vsel %vm1905, %v557, 0.0
      %v1938 = vsel %vm1906, %v559, 0.0
      %v1939 = vsel %vm1907, %v561, 0.0
      %v1940 = vsel %vm369, %v1908, 0.0
      %1941 = vadd.xlane.f32.xlu0 %v1940
      %v1942 = vpop.xlane.xlu0 %1941
      %v1943 = vsel %vm369, %v1909, 0.0
      %1944 = vadd.xlane.f32.xlu0 %v1943
      %v1945 = vpop.xlane.xlu0 %1944
      %v1946 = vsel %vm369, %v1910, 0.0
      %1947 = vadd.xlane.f32.xlu0 %v1946
      %v1948 = vpop.xlane.xlu0 %1947
      %v1949 = vsel %vm369, %v1911, 0.0
      %1950 = vadd.xlane.f32.xlu0 %v1949
      %v1951 = vpop.xlane.xlu0 %1950
      %v1952 = vsel %vm369, %v1912, 0.0
      %1953 = vadd.xlane.f32.xlu0 %v1952
      %v1954 = vpop.xlane.xlu0 %1953
      %v1955 = vsel %vm369, %v1913, 0.0
      %1956 = vadd.xlane.f32.xlu0 %v1955
      %v1957 = vpop.xlane.xlu0 %1956
      %v1958 = vsel %vm369, %v1914, 0.0
      %1959 = vadd.xlane.f32.xlu0 %v1958
      %v1960 = vpop.xlane.xlu0 %1959
      %v1961 = vsel %vm369, %v1915, 0.0
      %1962 = vadd.xlane.f32.xlu0 %v1961
      %v1963 = vpop.xlane.xlu0 %1962
      %v1964 = vsel %vm369, %v1916, 0.0
      %1965 = vadd.xlane.f32.xlu0 %v1964
      %v1966 = vpop.xlane.xlu0 %1965
      %v1967 = vsel %vm369, %v1917, 0.0
      %1968 = vadd.xlane.f32.xlu0 %v1967
      %v1969 = vpop.xlane.xlu0 %1968
      %v1970 = vsel %vm369, %v1918, 0.0
      %1971 = vadd.xlane.f32.xlu0 %v1970
      %v1972 = vpop.xlane.xlu0 %1971
      %v1973 = vsel %vm369, %v1919, 0.0
      %1974 = vadd.xlane.f32.xlu0 %v1973
      %v1975 = vpop.xlane.xlu0 %1974
      %v1976 = vsel %vm369, %v1920, 0.0
      %1977 = vadd.xlane.f32.xlu0 %v1976
      %v1978 = vpop.xlane.xlu0 %1977
      %v1979 = vsel %vm369, %v1921, 0.0
      %1980 = vadd.xlane.f32.xlu0 %v1979
      %v1981 = vpop.xlane.xlu0 %1980
      %v1982 = vsel %vm369, %v1922, 0.0
      %1983 = vadd.xlane.f32.xlu0 %v1982
      %v1984 = vpop.xlane.xlu0 %1983
      %v1985 = vsel %vm369, %v1923, 0.0
      %1986 = vadd.xlane.f32.xlu0 %v1985
      %v1987 = vpop.xlane.xlu0 %1986
      %v1988 = vsel %vm369, %v1924, 0.0
      %1989 = vadd.xlane.f32.xlu0 %v1988
      %v1990 = vpop.xlane.xlu0 %1989
      %v1991 = vsel %vm369, %v1925, 0.0
      %1992 = vadd.xlane.f32.xlu0 %v1991
      %v1993 = vpop.xlane.xlu0 %1992
      %v1994 = vsel %vm369, %v1926, 0.0
      %1995 = vadd.xlane.f32.xlu0 %v1994
      %v1996 = vpop.xlane.xlu0 %1995
      %v1997 = vsel %vm369, %v1927, 0.0
      %1998 = vadd.xlane.f32.xlu0 %v1997
      %v1999 = vpop.xlane.xlu0 %1998
      %v2000 = vsel %vm369, %v1928, 0.0
      %2001 = vadd.xlane.f32.xlu0 %v2000
      %v2002 = vpop.xlane.xlu0 %2001
      %v2003 = vsel %vm369, %v1929, 0.0
      %2004 = vadd.xlane.f32.xlu0 %v2003
      %v2005 = vpop.xlane.xlu0 %2004
      %v2006 = vsel %vm369, %v1930, 0.0
      %2007 = vadd.xlane.f32.xlu0 %v2006
      %v2008 = vpop.xlane.xlu0 %2007
      %v2009 = vsel %vm369, %v1931, 0.0
      %2010 = vadd.xlane.f32.xlu0 %v2009
      %v2011 = vpop.xlane.xlu0 %2010
      %v2012 = vsel %vm369, %v1932, 0.0
      %2013 = vadd.xlane.f32.xlu0 %v2012
      %v2014 = vpop.xlane.xlu0 %2013
      %v2015 = vsel %vm369, %v1933, 0.0
      %2016 = vadd.xlane.f32.xlu0 %v2015
      %v2017 = vpop.xlane.xlu0 %2016
      %v2018 = vsel %vm369, %v1934, 0.0
      %2019 = vadd.xlane.f32.xlu0 %v2018
      %v2020 = vpop.xlane.xlu0 %2019
      %v2021 = vsel %vm369, %v1935, 0.0
      %2022 = vadd.xlane.f32.xlu0 %v2021
      %v2023 = vpop.xlane.xlu0 %2022
      %v2024 = vsel %vm369, %v1936, 0.0
      %2025 = vadd.xlane.f32.xlu0 %v2024
      %v2026 = vpop.xlane.xlu0 %2025
      %v2027 = vsel %vm369, %v1937, 0.0
      %2028 = vadd.xlane.f32.xlu0 %v2027
      %v2029 = vpop.xlane.xlu0 %2028
      %v2030 = vsel %vm369, %v1938, 0.0
      %2031 = vadd.xlane.f32.xlu0 %v2030
      %v2032 = vpop.xlane.xlu0 %2031
      %v2033 = vsel %vm369, %v1939, 0.0
      %2034 = vadd.xlane.f32.xlu0 %v2033
      %v2035 = vpop.xlane.xlu0 %2034
      %v2036 = vmul.f32 %v1942, %v658
      %v2037 = vmul.f32 %v1945, %v659
      %v2038 = vmul.f32 %v1948, %v660
      %v2039 = vmul.f32 %v1951, %v661
      %v2040 = vmul.f32 %v1954, %v662
      %v2041 = vmul.f32 %v1957, %v663
      %v2042 = vmul.f32 %v1960, %v664
      %v2043 = vmul.f32 %v1963, %v665
      %v2044 = vmul.f32 %v1966, %v666
      %v2045 = vmul.f32 %v1969, %v667
      %v2046 = vmul.f32 %v1972, %v668
      %v2047 = vmul.f32 %v1975, %v669
      %v2048 = vmul.f32 %v1978, %v670
      %v2049 = vmul.f32 %v1981, %v671
      %v2050 = vmul.f32 %v1984, %v672
      %v2051 = vmul.f32 %v1987, %v673
      %v2052 = vmul.f32 %v1990, %v674
      %v2053 = vmul.f32 %v1993, %v675
      %v2054 = vmul.f32 %v1996, %v676
      %v2055 = vmul.f32 %v1999, %v677
      %v2056 = vmul.f32 %v2002, %v678
      %v2057 = vmul.f32 %v2005, %v679
      %v2058 = vmul.f32 %v2008, %v680
      %v2059 = vmul.f32 %v2011, %v681
      %v2060 = vmul.f32 %v2014, %v682
      %v2061 = vmul.f32 %v2017, %v683
      %v2062 = vmul.f32 %v2020, %v684
      %v2063 = vmul.f32 %v2023, %v685
      %v2064 = vmul.f32 %v2026, %v686
      %v2065 = vmul.f32 %v2029, %v687
      %v2066 = vmul.f32 %v2032, %v688
      %v2067 = vmul.f32 %v2035, %v689
      %v2068 = vsub.f32 1.0, %v1461
      %v2069 = vsub.f32 1.0, %v1463
      %v2070 = vsub.f32 1.0, %v1465
      %v2071 = vsub.f32 1.0, %v1467
      %v2072 = vsub.f32 1.0, %v1469
      %v2073 = vsub.f32 1.0, %v1471
      %v2074 = vsub.f32 1.0, %v1473
      %v2075 = vsub.f32 1.0, %v1475
      %v2076 = vsub.f32 1.0, %v1477
      %v2077 = vsub.f32 1.0, %v1479
      %v2078 = vsub.f32 1.0, %v1481
      %v2079 = vsub.f32 1.0, %v1483
      %v2080 = vsub.f32 1.0, %v1485
      %v2081 = vsub.f32 1.0, %v1487
      %v2082 = vsub.f32 1.0, %v1489
      %v2083 = vsub.f32 1.0, %v1491
      %v2084 = vsub.f32 1.0, %v1493
      %v2085 = vsub.f32 1.0, %v1495
      %v2086 = vsub.f32 1.0, %v1497
      %v2087 = vsub.f32 1.0, %v1499
      %v2088 = vsub.f32 1.0, %v1501
      %v2089 = vsub.f32 1.0, %v1503
      %v2090 = vsub.f32 1.0, %v1505
      %v2091 = vsub.f32 1.0, %v1507
      %v2092 = vsub.f32 1.0, %v1509
      %v2093 = vsub.f32 1.0, %v1511
      %v2094 = vsub.f32 1.0, %v1513
      %v2095 = vsub.f32 1.0, %v1515
      %v2096 = vsub.f32 1.0, %v1517
      %v2097 = vsub.f32 1.0, %v1519
      %v2098 = vsub.f32 1.0, %v1521
      %v2099 = vsub.f32 1.0, %v1523
      %v2100 = vmax.f32 %v2068, 0.0
      %v2101 = vmax.f32 %v2069, 0.0
      %v2102 = vmax.f32 %v2070, 0.0
      %v2103 = vmax.f32 %v2071, 0.0
      %v2104 = vmax.f32 %v2072, 0.0
      %v2105 = vmax.f32 %v2073, 0.0
      %v2106 = vmax.f32 %v2074, 0.0
      %v2107 = vmax.f32 %v2075, 0.0
      %v2108 = vmax.f32 %v2076, 0.0
      %v2109 = vmax.f32 %v2077, 0.0
      %v2110 = vmax.f32 %v2078, 0.0
      %v2111 = vmax.f32 %v2079, 0.0
      %v2112 = vmax.f32 %v2080, 0.0
      %v2113 = vmax.f32 %v2081, 0.0
      %v2114 = vmax.f32 %v2082, 0.0
      %v2115 = vmax.f32 %v2083, 0.0
      %v2116 = vmax.f32 %v2084, 0.0
      %v2117 = vmax.f32 %v2085, 0.0
      %v2118 = vmax.f32 %v2086, 0.0
      %v2119 = vmax.f32 %v2087, 0.0
      %v2120 = vmax.f32 %v2088, 0.0
      %v2121 = vmax.f32 %v2089, 0.0
      %v2122 = vmax.f32 %v2090, 0.0
      %v2123 = vmax.f32 %v2091, 0.0
      %v2124 = vmax.f32 %v2092, 0.0
      %v2125 = vmax.f32 %v2093, 0.0
      %v2126 = vmax.f32 %v2094, 0.0
      %v2127 = vmax.f32 %v2095, 0.0
      %v2128 = vmax.f32 %v2096, 0.0
      %v2129 = vmax.f32 %v2097, 0.0
      %v2130 = vmax.f32 %v2098, 0.0
      %v2131 = vmax.f32 %v2099, 0.0
      %v2132 = vrsqrt.pop %v2100
      %v2133 = vmul.f32 %v2100, %v2132
      %vm2134 = vcmp.eq.f32.partialorder %v2100, inf
      %v2135 = vsel %vm2134, %v2100, %v2133
      %vm2136 = vcmp.eq.f32.partialorder %v2100, 0.0
      %v2137 = vand.u32 %v2100, 2147483648
      %v2138 = vsel %vm2136, %v2137, %v2135
      %v2139 = vrsqrt.pop %v2101
      %v2140 = vmul.f32 %v2101, %v2139
      %vm2141 = vcmp.eq.f32.partialorder %v2101, inf
      %v2142 = vsel %vm2141, %v2101, %v2140
      %vm2143 = vcmp.eq.f32.partialorder %v2101, 0.0
      %v2144 = vand.u32 %v2101, 2147483648
      %v2145 = vsel %vm2143, %v2144, %v2142
      %v2146 = vrsqrt.pop %v2102
      %v2147 = vmul.f32 %v2102, %v2146
      %vm2148 = vcmp.eq.f32.partialorder %v2102, inf
      %v2149 = vsel %vm2148, %v2102, %v2147
      %vm2150 = vcmp.eq.f32.partialorder %v2102, 0.0
      %v2151 = vand.u32 %v2102, 2147483648
      %v2152 = vsel %vm2150, %v2151, %v2149
      %v2153 = vrsqrt.pop %v2103
      %v2154 = vmul.f32 %v2103, %v2153
      %vm2155 = vcmp.eq.f32.partialorder %v2103, inf
      %v2156 = vsel %vm2155, %v2103, %v2154
      %vm2157 = vcmp.eq.f32.partialorder %v2103, 0.0
      %v2158 = vand.u32 %v2103, 2147483648
      %v2159 = vsel %vm2157, %v2158, %v2156
      %v2160 = vrsqrt.pop %v2104
      %v2161 = vmul.f32 %v2104, %v2160
      %vm2162 = vcmp.eq.f32.partialorder %v2104, inf
      %v2163 = vsel %vm2162, %v2104, %v2161
      %vm2164 = vcmp.eq.f32.partialorder %v2104, 0.0
      %v2165 = vand.u32 %v2104, 2147483648
      %v2166 = vsel %vm2164, %v2165, %v2163
      %v2167 = vrsqrt.pop %v2105
      %v2168 = vmul.f32 %v2105, %v2167
      %vm2169 = vcmp.eq.f32.partialorder %v2105, inf
      %v2170 = vsel %vm2169, %v2105, %v2168
      %vm2171 = vcmp.eq.f32.partialorder %v2105, 0.0
      %v2172 = vand.u32 %v2105, 2147483648
      %v2173 = vsel %vm2171, %v2172, %v2170
      %v2174 = vrsqrt.pop %v2106
      %v2175 = vmul.f32 %v2106, %v2174
      %vm2176 = vcmp.eq.f32.partialorder %v2106, inf
      %v2177 = vsel %vm2176, %v2106, %v2175
      %vm2178 = vcmp.eq.f32.partialorder %v2106, 0.0
      %v2179 = vand.u32 %v2106, 2147483648
      %v2180 = vsel %vm2178, %v2179, %v2177
      %v2181 = vrsqrt.pop %v2107
      %v2182 = vmul.f32 %v2107, %v2181
      %vm2183 = vcmp.eq.f32.partialorder %v2107, inf
      %v2184 = vsel %vm2183, %v2107, %v2182
      %vm2185 = vcmp.eq.f32.partialorder %v2107, 0.0
      %v2186 = vand.u32 %v2107, 2147483648
      %v2187 = vsel %vm2185, %v2186, %v2184
      %v2188 = vrsqrt.pop %v2108
      %v2189 = vmul.f32 %v2108, %v2188
      %vm2190 = vcmp.eq.f32.partialorder %v2108, inf
      %v2191 = vsel %vm2190, %v2108, %v2189
      %vm2192 = vcmp.eq.f32.partialorder %v2108, 0.0
      %v2193 = vand.u32 %v2108, 2147483648
      %v2194 = vsel %vm2192, %v2193, %v2191
      %v2195 = vrsqrt.pop %v2109
      %v2196 = vmul.f32 %v2109, %v2195
      %vm2197 = vcmp.eq.f32.partialorder %v2109, inf
      %v2198 = vsel %vm2197, %v2109, %v2196
      %vm2199 = vcmp.eq.f32.partialorder %v2109, 0.0
      %v2200 = vand.u32 %v2109, 2147483648
      %v2201 = vsel %vm2199, %v2200, %v2198
      %v2202 = vrsqrt.pop %v2110
      %v2203 = vmul.f32 %v2110, %v2202
      %vm2204 = vcmp.eq.f32.partialorder %v2110, inf
      %v2205 = vsel %vm2204, %v2110, %v2203
      %vm2206 = vcmp.eq.f32.partialorder %v2110, 0.0
      %v2207 = vand.u32 %v2110, 2147483648
      %v2208 = vsel %vm2206, %v2207, %v2205
      %v2209 = vrsqrt.pop %v2111
      %v2210 = vmul.f32 %v2111, %v2209
      %vm2211 = vcmp.eq.f32.partialorder %v2111, inf
      %v2212 = vsel %vm2211, %v2111, %v2210
      %vm2213 = vcmp.eq.f32.partialorder %v2111, 0.0
      %v2214 = vand.u32 %v2111, 2147483648
      %v2215 = vsel %vm2213, %v2214, %v2212
      %v2216 = vrsqrt.pop %v2112
      %v2217 = vmul.f32 %v2112, %v2216
      %vm2218 = vcmp.eq.f32.partialorder %v2112, inf
      %v2219 = vsel %vm2218, %v2112, %v2217
      %vm2220 = vcmp.eq.f32.partialorder %v2112, 0.0
      %v2221 = vand.u32 %v2112, 2147483648
      %v2222 = vsel %vm2220, %v2221, %v2219
      %v2223 = vrsqrt.pop %v2113
      %v2224 = vmul.f32 %v2113, %v2223
      %vm2225 = vcmp.eq.f32.partialorder %v2113, inf
      %v2226 = vsel %vm2225, %v2113, %v2224
      %vm2227 = vcmp.eq.f32.partialorder %v2113, 0.0
      %v2228 = vand.u32 %v2113, 2147483648
      %v2229 = vsel %vm2227, %v2228, %v2226
      %v2230 = vrsqrt.pop %v2114
      %v2231 = vmul.f32 %v2114, %v2230
      %vm2232 = vcmp.eq.f32.partialorder %v2114, inf
      %v2233 = vsel %vm2232, %v2114, %v2231
      %vm2234 = vcmp.eq.f32.partialorder %v2114, 0.0
      %v2235 = vand.u32 %v2114, 2147483648
      %v2236 = vsel %vm2234, %v2235, %v2233
      %v2237 = vrsqrt.pop %v2115
      %v2238 = vmul.f32 %v2115, %v2237
      %vm2239 = vcmp.eq.f32.partialorder %v2115, inf
      %v2240 = vsel %vm2239, %v2115, %v2238
      %vm2241 = vcmp.eq.f32.partialorder %v2115, 0.0
      %v2242 = vand.u32 %v2115, 2147483648
      %v2243 = vsel %vm2241, %v2242, %v2240
      %v2244 = vrsqrt.pop %v2116
      %v2245 = vmul.f32 %v2116, %v2244
      %vm2246 = vcmp.eq.f32.partialorder %v2116, inf
      %v2247 = vsel %vm2246, %v2116, %v2245
      %vm2248 = vcmp.eq.f32.partialorder %v2116, 0.0
      %v2249 = vand.u32 %v2116, 2147483648
      %v2250 = vsel %vm2248, %v2249, %v2247
      %v2251 = vrsqrt.pop %v2117
      %v2252 = vmul.f32 %v2117, %v2251
      %vm2253 = vcmp.eq.f32.partialorder %v2117, inf
      %v2254 = vsel %vm2253, %v2117, %v2252
      %vm2255 = vcmp.eq.f32.partialorder %v2117, 0.0
      %v2256 = vand.u32 %v2117, 2147483648
      %v2257 = vsel %vm2255, %v2256, %v2254
      %v2258 = vrsqrt.pop %v2118
      %v2259 = vmul.f32 %v2118, %v2258
      %vm2260 = vcmp.eq.f32.partialorder %v2118, inf
      %v2261 = vsel %vm2260, %v2118, %v2259
      %vm2262 = vcmp.eq.f32.partialorder %v2118, 0.0
      %v2263 = vand.u32 %v2118, 2147483648
      %v2264 = vsel %vm2262, %v2263, %v2261
      %v2265 = vrsqrt.pop %v2119
      %v2266 = vmul.f32 %v2119, %v2265
      %vm2267 = vcmp.eq.f32.partialorder %v2119, inf
      %v2268 = vsel %vm2267, %v2119, %v2266
      %vm2269 = vcmp.eq.f32.partialorder %v2119, 0.0
      %v2270 = vand.u32 %v2119, 2147483648
      %v2271 = vsel %vm2269, %v2270, %v2268
      %v2272 = vrsqrt.pop %v2120
      %v2273 = vmul.f32 %v2120, %v2272
      %vm2274 = vcmp.eq.f32.partialorder %v2120, inf
      %v2275 = vsel %vm2274, %v2120, %v2273
      %vm2276 = vcmp.eq.f32.partialorder %v2120, 0.0
      %v2277 = vand.u32 %v2120, 2147483648
      %v2278 = vsel %vm2276, %v2277, %v2275
      %v2279 = vrsqrt.pop %v2121
      %v2280 = vmul.f32 %v2121, %v2279
      %vm2281 = vcmp.eq.f32.partialorder %v2121, inf
      %v2282 = vsel %vm2281, %v2121, %v2280
      %vm2283 = vcmp.eq.f32.partialorder %v2121, 0.0
      %v2284 = vand.u32 %v2121, 2147483648
      %v2285 = vsel %vm2283, %v2284, %v2282
      %v2286 = vrsqrt.pop %v2122
      %v2287 = vmul.f32 %v2122, %v2286
      %vm2288 = vcmp.eq.f32.partialorder %v2122, inf
      %v2289 = vsel %vm2288, %v2122, %v2287
      %vm2290 = vcmp.eq.f32.partialorder %v2122, 0.0
      %v2291 = vand.u32 %v2122, 2147483648
      %v2292 = vsel %vm2290, %v2291, %v2289
      %v2293 = vrsqrt.pop %v2123
      %v2294 = vmul.f32 %v2123, %v2293
      %vm2295 = vcmp.eq.f32.partialorder %v2123, inf
      %v2296 = vsel %vm2295, %v2123, %v2294
      %vm2297 = vcmp.eq.f32.partialorder %v2123, 0.0
      %v2298 = vand.u32 %v2123, 2147483648
      %v2299 = vsel %vm2297, %v2298, %v2296
      %v2300 = vrsqrt.pop %v2124
      %v2301 = vmul.f32 %v2124, %v2300
      %vm2302 = vcmp.eq.f32.partialorder %v2124, inf
      %v2303 = vsel %vm2302, %v2124, %v2301
      %vm2304 = vcmp.eq.f32.partialorder %v2124, 0.0
      %v2305 = vand.u32 %v2124, 2147483648
      %v2306 = vsel %vm2304, %v2305, %v2303
      %v2307 = vrsqrt.pop %v2125
      %v2308 = vmul.f32 %v2125, %v2307
      %vm2309 = vcmp.eq.f32.partialorder %v2125, inf
      %v2310 = vsel %vm2309, %v2125, %v2308
      %vm2311 = vcmp.eq.f32.partialorder %v2125, 0.0
      %v2312 = vand.u32 %v2125, 2147483648
      %v2313 = vsel %vm2311, %v2312, %v2310
      %v2314 = vrsqrt.pop %v2126
      %v2315 = vmul.f32 %v2126, %v2314
      %vm2316 = vcmp.eq.f32.partialorder %v2126, inf
      %v2317 = vsel %vm2316, %v2126, %v2315
      %vm2318 = vcmp.eq.f32.partialorder %v2126, 0.0
      %v2319 = vand.u32 %v2126, 2147483648
      %v2320 = vsel %vm2318, %v2319, %v2317
      %v2321 = vrsqrt.pop %v2127
      %v2322 = vmul.f32 %v2127, %v2321
      %vm2323 = vcmp.eq.f32.partialorder %v2127, inf
      %v2324 = vsel %vm2323, %v2127, %v2322
      %vm2325 = vcmp.eq.f32.partialorder %v2127, 0.0
      %v2326 = vand.u32 %v2127, 2147483648
      %v2327 = vsel %vm2325, %v2326, %v2324
      %v2328 = vrsqrt.pop %v2128
      %v2329 = vmul.f32 %v2128, %v2328
      %vm2330 = vcmp.eq.f32.partialorder %v2128, inf
      %v2331 = vsel %vm2330, %v2128, %v2329
      %vm2332 = vcmp.eq.f32.partialorder %v2128, 0.0
      %v2333 = vand.u32 %v2128, 2147483648
      %v2334 = vsel %vm2332, %v2333, %v2331
      %v2335 = vrsqrt.pop %v2129
      %v2336 = vmul.f32 %v2129, %v2335
      %vm2337 = vcmp.eq.f32.partialorder %v2129, inf
      %v2338 = vsel %vm2337, %v2129, %v2336
      %vm2339 = vcmp.eq.f32.partialorder %v2129, 0.0
      %v2340 = vand.u32 %v2129, 2147483648
      %v2341 = vsel %vm2339, %v2340, %v2338
      %v2342 = vrsqrt.pop %v2130
      %v2343 = vmul.f32 %v2130, %v2342
      %vm2344 = vcmp.eq.f32.partialorder %v2130, inf
      %v2345 = vsel %vm2344, %v2130, %v2343
      %vm2346 = vcmp.eq.f32.partialorder %v2130, 0.0
      %v2347 = vand.u32 %v2130, 2147483648
      %v2348 = vsel %vm2346, %v2347, %v2345
      %v2349 = vrsqrt.pop %v2131
      %v2350 = vmul.f32 %v2131, %v2349
      %vm2351 = vcmp.eq.f32.partialorder %v2131, inf
      %v2352 = vsel %vm2351, %v2131, %v2350
      %vm2353 = vcmp.eq.f32.partialorder %v2131, 0.0
      %v2354 = vand.u32 %v2131, 2147483648
      %v2355 = vsel %vm2353, %v2354, %v2352
      %v2356 = vmul.f32 %v2138, %v1366
      %v2357 = vmul.f32 %v2145, %v1369
      %v2358 = vmul.f32 %v2152, %v1372
      %v2359 = vmul.f32 %v2159, %v1375
      %v2360 = vmul.f32 %v2166, %v1378
      %v2361 = vmul.f32 %v2173, %v1381
      %v2362 = vmul.f32 %v2180, %v1384
      %v2363 = vmul.f32 %v2187, %v1387
      %v2364 = vmul.f32 %v2194, %v1390
      %v2365 = vmul.f32 %v2201, %v1393
      %v2366 = vmul.f32 %v2208, %v1396
      %v2367 = vmul.f32 %v2215, %v1399
      %v2368 = vmul.f32 %v2222, %v1402
      %v2369 = vmul.f32 %v2229, %v1405
      %v2370 = vmul.f32 %v2236, %v1408
      %v2371 = vmul.f32 %v2243, %v1411
      %v2372 = vmul.f32 %v2250, %v1414
      %v2373 = vmul.f32 %v2257, %v1417
      %v2374 = vmul.f32 %v2264, %v1420
      %v2375 = vmul.f32 %v2271, %v1423
      %v2376 = vmul.f32 %v2278, %v1426
      %v2377 = vmul.f32 %v2285, %v1429
      %v2378 = vmul.f32 %v2292, %v1432
      %v2379 = vmul.f32 %v2299, %v1435
      %v2380 = vmul.f32 %v2306, %v1438
      %v2381 = vmul.f32 %v2313, %v1441
      %v2382 = vmul.f32 %v2320, %v1444
      %v2383 = vmul.f32 %v2327, %v1447
      %v2384 = vmul.f32 %v2334, %v1450
      %v2385 = vmul.f32 %v2341, %v1453
      %v2386 = vmul.f32 %v2348, %v1456
      %v2387 = vmul.f32 %v2355, %v1459
      %v2388 = vrcp.pop %v1108
      %v2389 = vmul.f32 %v2356, %v2388
      %v2390 = vrcp.pop %v1111
      %v2391 = vmul.f32 %v2357, %v2390
      %v2392 = vrcp.pop %v1114
      %v2393 = vmul.f32 %v2358, %v2392
      %v2394 = vrcp.pop %v1117
      %v2395 = vmul.f32 %v2359, %v2394
      %v2396 = vrcp.pop %v1120
      %v2397 = vmul.f32 %v2360, %v2396
      %v2398 = vrcp.pop %v1123
      %v2399 = vmul.f32 %v2361, %v2398
      %v2400 = vrcp.pop %v1126
      %v2401 = vmul.f32 %v2362, %v2400
      %v2402 = vrcp.pop %v1129
      %v2403 = vmul.f32 %v2363, %v2402
      %v2404 = vrcp.pop %v1132
      %v2405 = vmul.f32 %v2364, %v2404
      %v2406 = vrcp.pop %v1135
      %v2407 = vmul.f32 %v2365, %v2406
      %v2408 = vrcp.pop %v1138
      %v2409 = vmul.f32 %v2366, %v2408
      %v2410 = vrcp.pop %v1141
      %v2411 = vmul.f32 %v2367, %v2410
      %v2412 = vrcp.pop %v1144
      %v2413 = vmul.f32 %v2368, %v2412
      %v2414 = vrcp.pop %v1147
      %v2415 = vmul.f32 %v2369, %v2414
      %v2416 = vrcp.pop %v1150
      %v2417 = vmul.f32 %v2370, %v2416
      %v2418 = vrcp.pop %v1153
      %v2419 = vmul.f32 %v2371, %v2418
      %v2420 = vrcp.pop %v1156
      %v2421 = vmul.f32 %v2372, %v2420
      %v2422 = vrcp.pop %v1159
      %v2423 = vmul.f32 %v2373, %v2422
      %v2424 = vrcp.pop %v1162
      %v2425 = vmul.f32 %v2374, %v2424
      %v2426 = vrcp.pop %v1165
      %v2427 = vmul.f32 %v2375, %v2426
      %v2428 = vrcp.pop %v1168
      %v2429 = vmul.f32 %v2376, %v2428
      %v2430 = vrcp.pop %v1171
      %v2431 = vmul.f32 %v2377, %v2430
      %v2432 = vrcp.pop %v1174
      %v2433 = vmul.f32 %v2378, %v2432
      %v2434 = vrcp.pop %v1177
      %v2435 = vmul.f32 %v2379, %v2434
      %v2436 = vrcp.pop %v1180
      %v2437 = vmul.f32 %v2380, %v2436
      %v2438 = vrcp.pop %v1183
      %v2439 = vmul.f32 %v2381, %v2438
      %v2440 = vrcp.pop %v1186
      %v2441 = vmul.f32 %v2382, %v2440
      %v2442 = vrcp.pop %v1189
      %v2443 = vmul.f32 %v2383, %v2442
      %v2444 = vrcp.pop %v1192
      %v2445 = vmul.f32 %v2384, %v2444
      %v2446 = vrcp.pop %v1195
      %v2447 = vmul.f32 %v2385, %v2446
      %v2448 = vrcp.pop %v1198
      %v2449 = vmul.f32 %v2386, %v2448
      %v2450 = vrcp.pop %v1201
      %v2451 = vmul.f32 %v2387, %v2450
      %v2452 = vsub.f32 1.0, %v2036
      %v2453 = vsub.f32 1.0, %v2037
      %v2454 = vsub.f32 1.0, %v2038
      %v2455 = vsub.f32 1.0, %v2039
      %v2456 = vsub.f32 1.0, %v2040
      %v2457 = vsub.f32 1.0, %v2041
      %v2458 = vsub.f32 1.0, %v2042
      %v2459 = vsub.f32 1.0, %v2043
      %v2460 = vsub.f32 1.0, %v2044
      %v2461 = vsub.f32 1.0, %v2045
      %v2462 = vsub.f32 1.0, %v2046
      %v2463 = vsub.f32 1.0, %v2047
      %v2464 = vsub.f32 1.0, %v2048
      %v2465 = vsub.f32 1.0, %v2049
      %v2466 = vsub.f32 1.0, %v2050
      %v2467 = vsub.f32 1.0, %v2051
      %v2468 = vsub.f32 1.0, %v2052
      %v2469 = vsub.f32 1.0, %v2053
      %v2470 = vsub.f32 1.0, %v2054
      %v2471 = vsub.f32 1.0, %v2055
      %v2472 = vsub.f32 1.0, %v2056
      %v2473 = vsub.f32 1.0, %v2057
      %v2474 = vsub.f32 1.0, %v2058
      %v2475 = vsub.f32 1.0, %v2059
      %v2476 = vsub.f32 1.0, %v2060
      %v2477 = vsub.f32 1.0, %v2061
      %v2478 = vsub.f32 1.0, %v2062
      %v2479 = vsub.f32 1.0, %v2063
      %v2480 = vsub.f32 1.0, %v2064
      %v2481 = vsub.f32 1.0, %v2065
      %v2482 = vsub.f32 1.0, %v2066
      %v2483 = vsub.f32 1.0, %v2067
      %v2484 = vadd.f32 %v2389, %v2452
      %v2485 = vadd.f32 %v2391, %v2453
      %v2486 = vadd.f32 %v2393, %v2454
      %v2487 = vadd.f32 %v2395, %v2455
      %v2488 = vadd.f32 %v2397, %v2456
      %v2489 = vadd.f32 %v2399, %v2457
      %v2490 = vadd.f32 %v2401, %v2458
      %v2491 = vadd.f32 %v2403, %v2459
      %v2492 = vadd.f32 %v2405, %v2460
      %v2493 = vadd.f32 %v2407, %v2461
      %v2494 = vadd.f32 %v2409, %v2462
      %v2495 = vadd.f32 %v2411, %v2463
      %v2496 = vadd.f32 %v2413, %v2464
      %v2497 = vadd.f32 %v2415, %v2465
      %v2498 = vadd.f32 %v2417, %v2466
      %v2499 = vadd.f32 %v2419, %v2467
      %v2500 = vadd.f32 %v2421, %v2468
      %v2501 = vadd.f32 %v2423, %v2469
      %v2502 = vadd.f32 %v2425, %v2470
      %v2503 = vadd.f32 %v2427, %v2471
      %v2504 = vadd.f32 %v2429, %v2472
      %v2505 = vadd.f32 %v2431, %v2473
      %v2506 = vadd.f32 %v2433, %v2474
      %v2507 = vadd.f32 %v2435, %v2475
      %v2508 = vadd.f32 %v2437, %v2476
      %v2509 = vadd.f32 %v2439, %v2477
      %v2510 = vadd.f32 %v2441, %v2478
      %v2511 = vadd.f32 %v2443, %v2479
      %v2512 = vadd.f32 %v2445, %v2480
      %v2513 = vadd.f32 %v2447, %v2481
      %v2514 = vadd.f32 %v2449, %v2482
      %v2515 = vadd.f32 %v2451, %v2483
      %v2516 = vsel %vm337, %v2484, 0.0
      %v2517 = vsel %vm338, %v2485, 0.0
      %v2518 = vsel %vm339, %v2486, 0.0
      %v2519 = vsel %vm340, %v2487, 0.0
      %v2520 = vsel %vm341, %v2488, 0.0
      %v2521 = vsel %vm342, %v2489, 0.0
      %v2522 = vsel %vm343, %v2490, 0.0
      %v2523 = vsel %vm344, %v2491, 0.0
      %v2524 = vsel %vm345, %v2492, 0.0
      %v2525 = vsel %vm346, %v2493, 0.0
      %v2526 = vsel %vm347, %v2494, 0.0
      %v2527 = vsel %vm348, %v2495, 0.0
      %v2528 = vsel %vm349, %v2496, 0.0
      %v2529 = vsel %vm350, %v2497, 0.0
      %v2530 = vsel %vm351, %v2498, 0.0
      %v2531 = vsel %vm352, %v2499, 0.0
      %v2532 = vsel %vm353, %v2500, 0.0
      %v2533 = vsel %vm354, %v2501, 0.0
      %v2534 = vsel %vm355, %v2502, 0.0
      %v2535 = vsel %vm356, %v2503, 0.0
      %v2536 = vsel %vm357, %v2504, 0.0
      %v2537 = vsel %vm358, %v2505, 0.0
      %v2538 = vsel %vm359, %v2506, 0.0
      %v2539 = vsel %vm360, %v2507, 0.0
      %v2540 = vsel %vm361, %v2508, 0.0
      %v2541 = vsel %vm362, %v2509, 0.0
      %v2542 = vsel %vm363, %v2510, 0.0
      %v2543 = vsel %vm364, %v2511, 0.0
      %v2544 = vsel %vm365, %v2512, 0.0
      %v2545 = vsel %vm366, %v2513, 0.0
      %v2546 = vsel %vm367, %v2514, 0.0
      %v2547 = vsel %vm368, %v2515, 0.0
      %v2548 = vadd.f32 %v2516, %v2517
      %v2549 = vadd.f32 %v2548, %v2518
      %v2550 = vadd.f32 %v2549, %v2519
      %v2551 = vadd.f32 %v2550, %v2520
      %v2552 = vadd.f32 %v2551, %v2521
      %v2553 = vadd.f32 %v2552, %v2522
      %v2554 = vadd.f32 %v2553, %v2523
      %v2555 = vadd.f32 %v2554, %v2524
      %v2556 = vadd.f32 %v2555, %v2525
      %v2557 = vadd.f32 %v2556, %v2526
      %v2558 = vadd.f32 %v2557, %v2527
      %v2559 = vadd.f32 %v2558, %v2528
      %v2560 = vadd.f32 %v2559, %v2529
      %v2561 = vadd.f32 %v2560, %v2530
      %v2562 = vadd.f32 %v2561, %v2531
      %v2563 = vadd.f32 %v2562, %v2532
      %v2564 = vadd.f32 %v2563, %v2533
      %v2565 = vadd.f32 %v2564, %v2534
      %v2566 = vadd.f32 %v2565, %v2535
      %v2567 = vadd.f32 %v2566, %v2536
      %v2568 = vadd.f32 %v2567, %v2537
      %v2569 = vadd.f32 %v2568, %v2538
      %v2570 = vadd.f32 %v2569, %v2539
      %v2571 = vadd.f32 %v2570, %v2540
      %v2572 = vadd.f32 %v2571, %v2541
      %v2573 = vadd.f32 %v2572, %v2542
      %v2574 = vadd.f32 %v2573, %v2543
      %v2575 = vadd.f32 %v2574, %v2544
      %v2576 = vadd.f32 %v2575, %v2545
      %v2577 = vadd.f32 %v2576, %v2546
      %v2578 = vadd.f32 %v2577, %v2547
      %v2579 = vrot.slane %v2578, 4
      %v2580 = vadd.f32 %v2578, %v2579
      %v2581 = vrot.slane %v2580, 2
      %v2582 = vadd.f32 %v2580, %v2581
      %v2583 = vrot.slane %v2582, 1
      %v2584 = vadd.f32 %v2582, %v2583
      %2585 = vst [vmem:[%s205] sm:$0xff] %v2584
      %p2586 = scmp.lt.s32.totalorder %s13, 3
      %s2587 = scalar_select %p2586, %s13, 3
      %s2588 = smul.addr %s2587, 8
      %s2589 = scalar_lea.vmem %s2, %s2588
      // Predicated region
      $region29: #{nfl_and_mae_loss.1} parent=27 // pred_check
        %p2590 = pneg %p83
      $region30: #{nfl_and_mae_loss.1} parent=27 // pred_check_branch
        %2592 = sbr.rel (%p2590) target = $region32
      $region31: #{nfl_and_mae_loss.1} parent=27 // pred_region
        _
      $region32: #{nfl_and_mae_loss.1} parent=27 // pred_fallthru
        _
    $region28: #{nfl_and_mae_loss.1} parent=5 // pred_fallthru
      _
    %p2593 = scmp.le.s32.totalorder 2, %s8
    // Predicated region
    $region33: #{nfl_and_mae_loss.1} parent=5 // pred_check
      %p2594 = pneg %p2593
    $region34: #{nfl_and_mae_loss.1} parent=5 // pred_check_branch
      %2596 = sbr.rel (%p2594) target = $region36
    $region35: #{nfl_and_mae_loss.1} parent=5 // pred_region
      %s2597 = ssub.s32 %s8, 2
      // Predicated region
      $region37: #{nfl_and_mae_loss.1} parent=35 // pred_check
        %p2598 = pneg %p89
      $region38: #{nfl_and_mae_loss.1} parent=35 // pred_check_branch
        %2600 = sbr.rel (%p2598) target = $region40
      $region39: #{nfl_and_mae_loss.1} parent=35 // pred_region
        %p2601 = scmp.lt.s32.totalorder %s14, 3
        %s2602 = scalar_select %p2601, %s14, 3
        %s2603 = smul.addr %s2602, 8
        %s2604 = scalar_lea.vmem %s2, %s2603
      $region40: #{nfl_and_mae_loss.1} parent=35 // pred_fallthru
        _
    $region36: #{nfl_and_mae_loss.1} parent=5 // pred_fallthru
      _
  $region6: #{nfl_and_mae_loss.1} parent=0 // loop_footer
    %s12 = sadd.s32 1, %s8
  $region7: #{nfl_and_mae_loss.1} parent=0 // loop_footer_branch
    %7 = sbr.rel target = $region3
  $region8: #{nfl_and_mae_loss.1} parent=0 // loop_exit
    _

</llo_original>
